<compile_context>
chip_gen: v7x
topology: tpu7x:2x2x1
jax: 0.10.0
libtpu: 0.0.40
codegen_flags: <defaults>
</compile_context>

<pallas_src>
import math

import jax
import jax.numpy as jnp
import numpy as np
from jax.experimental import pallas as pl
from jax.experimental.pallas import tpu as pltpu

# ----------------------------- problem sizes --------------------------------
D_MODEL = 32
NHEAD = 4
DIM_FF = 64
SEQ = 8
BATCH = 2
EPS = 1e-5
HEAD_DIM = D_MODEL // NHEAD
S_TOK = SEQ * BATCH               # flattened token rows; row s = l * BATCH + n

# --------------------------- packed-parameter slab ---------------------------
# One (80, 128) f32 slab (40 KB); every parameter lives at a static offset.
#   rows  0:32  cols  0:96   w_qkv_t = [Wq^T*scale | Wk^T | Wv^T]          (32, 96)
#   rows  0:32  cols 96:128  wo_t    = Wo^T                                (32, 32)
#   rows 32:64  cols  0:64   w1_t    = W1^T                                (32, 64)
#   rows 32:64  cols 64:128  w2      = W2 natural (E,F), contracted on F   (32, 64)
#   rows 64:80  cols  0:16   additive batch mask (0 / -1e30)               (16, 16)
#   rows 64:80  cols 16:24   attw selector (1/H at [j, j//N])              (16,  8)
#   row  64     cols 32:128  b_qkv = [bq*scale | bk | bv]                  (96,)
#   row  65     cols 32:128  [bo | b1]
#   row  66     cols 32:128  [b2 | g1 | be1]
#   row  67     cols 32:96   [g2 | be2]
R_FF = 32
R_AUX = 64
R_BQKV = 64
R_BOB1 = 65
R_B2G1 = 66
R_G2B2 = 67
C_VEC = 32
SLAB_ROWS = 80
SLAB_COLS = 128


def pack_params(params):
    """Fold softmax scale into Wq/bq, fold 1/H into the attw selector, pack one slab."""
    E, F, H, HD = D_MODEL, DIM_FF, NHEAD, HEAD_DIM
    N, L, S = BATCH, SEQ, S_TOK
    scale = 1.0 / math.sqrt(HD)
    g = lambda k: np.asarray(params[k], np.float32)

    slab = np.zeros((SLAB_ROWS, SLAB_COLS), np.float32)
    # fused QKV weight (scale folded into Wq) and output projection
    slab[0:E, 0:3 * E] = np.concatenate([g("wq").T * scale, g("wk").T, g("wv").T], axis=1)
    slab[0:E, 3 * E:4 * E] = g("wo").T
    # feed-forward weights
    slab[R_FF:R_FF + E, 0:F] = g("w1").T
    slab[R_FF:R_FF + E, F:2 * F] = g("w2")          # natural (E, F); contracted on F in-kernel

    # additive batch mask: token row s = l*N + n; cross-batch pairs get -1e30
    rows = np.arange(S)
    same = (rows[:, None] % N) == (rows[None, :] % N)
    slab[R_AUX:R_AUX + S, 0:S] = np.where(same, 0.0, -1e30).astype(np.float32)
    # attn-weight selector: key row j belongs to sequence position j // N; fold 1/H average
    sel = np.zeros((S, L), np.float32)
    sel[rows, rows // N] = 1.0 / H
    slab[R_AUX:R_AUX + S, S:S + L] = sel

    # bias / gain vectors
    slab[R_BQKV, C_VEC:C_VEC + 3 * E] = np.concatenate(
        [g("bq").ravel() * scale, g("bk").ravel(), g("bv").ravel()])
    slab[R_BOB1, C_VEC:C_VEC + E] = g("bo").ravel()
    slab[R_BOB1, C_VEC + E:C_VEC + E + F] = g("b1").ravel()
    slab[R_B2G1, C_VEC:C_VEC + E] = g("b2").ravel()
    slab[R_B2G1, C_VEC + E:C_VEC + 2 * E] = g("g1").ravel()
    slab[R_B2G1, C_VEC + 2 * E:C_VEC + 3 * E] = g("be1").ravel()
    slab[R_G2B2, C_VEC:C_VEC + E] = g("g2").ravel()
    slab[R_G2B2, C_VEC + E:C_VEC + 2 * E] = g("be2").ravel()
    return jnp.asarray(slab)


# ------------------------------ Pallas kernel --------------------------------
def encoder_layer_kernel(x_ref, w_ref, out_ref, attw_ref):
    E, F, H, HD = D_MODEL, DIM_FF, NHEAD, HEAD_DIM
    N, L, S = BATCH, SEQ, S_TOK

    x2d = x_ref[...].reshape(S, E)                           # (16, 32); row s = l*N + n

    # ---- static slices of the packed parameter slab ----
    w_qkv_t = w_ref[0:E, 0:3 * E]                            # (32, 96)
    wo_t = w_ref[0:E, 3 * E:4 * E]                           # (32, 32)
    w1_t = w_ref[R_FF:R_FF + E, 0:F]                         # (32, 64)
    w2 = w_ref[R_FF:R_FF + E, F:2 * F]                       # (32, 64)  natural (E, F)
    mask = w_ref[R_AUX:R_AUX + S, 0:S]                       # (16, 16)  0 / -1e30
    r_sel = w_ref[R_AUX:R_AUX + S, S:S + L]                  # (16, 8)   (1/H)-scaled selector
    b_qkv = w_ref[R_BQKV:R_BQKV + 1, C_VEC:C_VEC + 3 * E]    # (1, 96)
    bo = w_ref[R_BOB1:R_BOB1 + 1, C_VEC:C_VEC + E]
    b1 = w_ref[R_BOB1:R_BOB1 + 1, C_VEC + E:C_VEC + E + F]
    b2 = w_ref[R_B2G1:R_B2G1 + 1, C_VEC:C_VEC + E]
    g1 = w_ref[R_B2G1:R_B2G1 + 1, C_VEC + E:C_VEC + 2 * E]
    be1 = w_ref[R_B2G1:R_B2G1 + 1, C_VEC + 2 * E:C_VEC + 3 * E]
    g2 = w_ref[R_G2B2:R_G2B2 + 1, C_VEC:C_VEC + E]
    be2 = w_ref[R_G2B2:R_G2B2 + 1, C_VEC + E:C_VEC + 2 * E]

    # ---- fused QKV: ONE lane-dense matmul (softmax scale folded into Wq / bq) ----
    qkv = jnp.dot(x2d, w_qkv_t, preferred_element_type=jnp.float32) + b_qkv      # (16, 96)

    def split_heads(base):                                   # static lane slices -> (H, S, HD)
        return jnp.stack(
            [qkv[:, base + h * HD: base + (h + 1) * HD] for h in range(H)], axis=0)

    q, k, v = split_heads(0), split_heads(E), split_heads(2 * E)                 # (4, 16, 8)

    # ---- attention over ALL token rows; cross-batch pairs killed by the additive mask ----
    scores = jnp.einsum("hqd,hkd->hqk", q, k,
                        preferred_element_type=jnp.float32) + mask               # (4, 16, 16)
    scores = scores - jnp.max(scores, axis=-1, keepdims=True)
    ex = jnp.exp(scores)                                     # masked entries underflow to 0.0
    p = ex * pl.reciprocal(jnp.sum(ex, axis=-1, keepdims=True), approx=False)

    # head-averaged attention weights of query position 0 -> (N, L)
    # (query rows for l == 0 are rows 0..N-1; r_sel folds the key-row -> seq-pos gather
    #  and the 1/H head average; cross-batch probabilities are exactly zero)
    attw_ref[...] = jnp.dot(jnp.sum(p[:, 0:N, :], axis=0), r_sel,
                            preferred_element_type=jnp.float32)                  # (2, 8)

    ctx = jnp.einsum("hqk,hkd->hqd", p, v, preferred_element_type=jnp.float32)   # (4, 16, 8)
    ctx2d = jnp.concatenate([ctx[h] for h in range(H)], axis=-1)                 # (16, 32)

    # ---- output projection: single matmul ----
    attn = jnp.dot(ctx2d, wo_t, preferred_element_type=jnp.float32) + bo         # (16, 32)

    # ---- residual + LayerNorm1 (post-norm) ----
    x1 = x2d + attn
    mu1 = jnp.mean(x1, axis=-1, keepdims=True)
    var1 = jnp.mean((x1 - mu1) ** 2, axis=-1, keepdims=True)
    x1n = (x1 - mu1) * jax.lax.rsqrt(var1 + EPS) * g1 + be1

    # ---- feed-forward (ReLU); dropout is identity in eval mode ----
    hid = jnp.maximum(jnp.dot(x1n, w1_t, preferred_element_type=jnp.float32) + b1, 0.0)
    ff = jnp.einsum("sf,ef->se", hid, w2, preferred_element_type=jnp.float32) + b2

    # ---- residual + LayerNorm2 ----
    x2 = x1n + ff
    mu2 = jnp.mean(x2, axis=-1, keepdims=True)
    var2 = jnp.mean((x2 - mu2) ** 2, axis=-1, keepdims=True)
    out = (x2 - mu2) * jax.lax.rsqrt(var2 + EPS) * g2 + be2

    out_ref[...] = out.reshape(L, N, E)


# ------------------------------ wrapper ---------------------------------------
def transformer_encoder_layer(src, slab):
    """src: (L, N, E) f32 (batch_first=False), slab: packed params.
    Returns (out (L, N, E), attn_weights (N, L)).  No wrapper-side layout ops."""
    L, N, E = src.shape
    return pl.pallas_call(
        encoder_layer_kernel,
        out_shape=(
            jax.ShapeDtypeStruct((L, N, E), jnp.float32),
            jax.ShapeDtypeStruct((N, L), jnp.float32),
        ),
        grid=(1,),                                           # single step: whole slab
        in_specs=[
            pl.BlockSpec((L, N, E), lambda i: (0, 0, 0)),
            pl.BlockSpec((SLAB_ROWS, SLAB_COLS), lambda i: (0, 0)),
        ],
        out_specs=(
            pl.BlockSpec((L, N, E), lambda i: (0, 0, 0)),
            pl.BlockSpec((N, L), lambda i: (0, 0)),
        ),
        compiler_params=pltpu.CompilerParams(
            dimension_semantics=("arbitrary",)),
    )(src, slab)


# --------------------------- deterministic params -----------------------------
def make_params(key):
    ks = jax.random.split(key, 12)

    def init(k, shape, scale=0.1):
        return jax.random.normal(k, shape, jnp.float32) * scale

    E, F = D_MODEL, DIM_FF
    return {
        "wq": init(ks[0], (E, E)), "bq": init(ks[1], (1, E)),
        "wk": init(ks[2], (E, E)), "bk": init(ks[3], (1, E)),
        "wv": init(ks[4], (E, E)), "bv": init(ks[5], (1, E)),
        "wo": init(ks[6], (E, E)), "bo": init(ks[7], (1, E)),
        "g1": jnp.ones((1, E), jnp.float32), "be1": jnp.zeros((1, E), jnp.float32),
        "w1": init(ks[8], (F, E)), "b1": init(ks[9], (1, F)),
        "w2": init(ks[10], (E, F)), "b2": init(ks[11], (1, E)),
        "g2": jnp.ones((1, E), jnp.float32), "be2": jnp.zeros((1, E), jnp.float32),
    }


# ------------------------------ pure-JAX reference ----------------------------
def reference(src, p):
    x = jnp.transpose(src, (1, 0, 2))                # (N, L, E)
    N, L, E = x.shape
    q = x @ p["wq"].T + p["bq"]
    k = x @ p["wk"].T + p["bk"]
    v = x @ p["wv"].T + p["bv"]

    def split(t):
        return jnp.transpose(t.reshape(N, L, NHEAD, HEAD_DIM), (0, 2, 1, 3))

    qh, kh, vh = split(q), split(k), split(v)
    s = jnp.einsum("nhqd,nhkd->nhqk", qh, kh) / math.sqrt(HEAD_DIM)
    pw = jax.nn.softmax(s, axis=-1)
    attn = jnp.einsum("nhqk,nhkd->nhqd", pw, vh)
    attn = jnp.transpose(attn, (0, 2, 1, 3)).reshape(N, L, E)
    attn = attn @ p["wo"].T + p["bo"]
    w_avg = jnp.mean(pw, axis=1)[:, 0, :]            # (N, L)

    def ln(t, g, b):
        mu = jnp.mean(t, -1, keepdims=True)
        var = jnp.mean((t - mu) ** 2, -1, keepdims=True)
        return (t - mu) / jnp.sqrt(var + EPS) * g + b

    x1 = ln(x + attn, p["g1"], p["be1"])
    ff = jnp.maximum(x1 @ p["w1"].T + p["b1"], 0.0) @ p["w2"].T + p["b2"]
    x2 = ln(x1 + ff, p["g2"], p["be2"])
    return jnp.transpose(x2, (1, 0, 2)), w_avg


# ----------------------------------- main --------------------------------------
if __name__ == "__main__":
    key = jax.random.PRNGKey(0)
    k_src, k_par = jax.random.split(key)
    src = jax.random.normal(k_src, (SEQ, BATCH, D_MODEL), jnp.float32)
    params = make_params(k_par)
    slab = pack_params(params)

    y, attn_w = transformer_encoder_layer(src, slab)
    jax.block_until_ready((y, attn_w))

    y_ref, w_ref_ = reference(src, params)
    assert np.allclose(np.asarray(y), np.asarray(y_ref), atol=1e-4), "output mismatch"
    assert np.allclose(np.asarray(attn_w), np.asarray(w_ref_), atol=1e-5), "attn-weight mismatch"

    print("KERNEL_OK")
</pallas_src>

<mosaic_0001>
module attributes {stable_mosaic.version = 11 : i64} {
  func.func @encoder_layer_kernel(%arg0: i32, %arg1: memref<8x2x32xf32, #tpu.memory_space<vmem>>, %arg2: memref<80x128xf32, #tpu.memory_space<vmem>>, %arg3: memref<8x2x32xf32, #tpu.memory_space<vmem>>, %arg4: memref<2x8xf32, #tpu.memory_space<vmem>>) attributes {dimension_semantics = [#tpu.dimension_semantics<arbitrary>], iteration_bounds = array<i64: 1>, scalar_prefetch = 0 : i64, scratch_operands = 0 : i64, tpu.core_type = #tpu.core_type<tc>, window_params = [{pipeline_mode = #tpu.pipeline_mode<synchronous>, transform_indices = @transform_0, window_bounds = array<i64: 8, 2, 32>}, {pipeline_mode = #tpu.pipeline_mode<synchronous>, transform_indices = @transform_1, window_bounds = array<i64: 80, 128>}, {pipeline_mode = #tpu.pipeline_mode<synchronous>, transform_indices = @transform_2, window_bounds = array<i64: 8, 2, 32>}, {pipeline_mode = #tpu.pipeline_mode<synchronous>, transform_indices = @transform_3, window_bounds = array<i64: 2, 8>}]} {
    %c0 = arith.constant 0 : index
    %c0_0 = arith.constant 0 : index
    %c0_1 = arith.constant 0 : index
    %0 = vector.load %arg1[%c0, %c0_0, %c0_1] : memref<8x2x32xf32, #tpu.memory_space<vmem>>, vector<8x2x32xf32>
    %1 = vector.shape_cast %0 : vector<8x2x32xf32> to vector<16x32xf32>
    %c0_2 = arith.constant 0 : index
    %c0_3 = arith.constant 0 : index
    %2 = vector.load %arg2[%c0_2, %c0_3] : memref<80x128xf32, #tpu.memory_space<vmem>>, vector<32x96xf32>
    %c0_4 = arith.constant 0 : index
    %c96 = arith.constant 96 : index
    %3 = vector.load %arg2[%c0_4, %c96] : memref<80x128xf32, #tpu.memory_space<vmem>>, vector<32x32xf32>
    %c32 = arith.constant 32 : index
    %c0_5 = arith.constant 0 : index
    %4 = vector.load %arg2[%c32, %c0_5] : memref<80x128xf32, #tpu.memory_space<vmem>>, vector<32x64xf32>
    %c32_6 = arith.constant 32 : index
    %c64 = arith.constant 64 : index
    %5 = vector.load %arg2[%c32_6, %c64] : memref<80x128xf32, #tpu.memory_space<vmem>>, vector<32x64xf32>
    %c64_7 = arith.constant 64 : index
    %c0_8 = arith.constant 0 : index
    %6 = vector.load %arg2[%c64_7, %c0_8] : memref<80x128xf32, #tpu.memory_space<vmem>>, vector<16x16xf32>
    %c64_9 = arith.constant 64 : index
    %c16 = arith.constant 16 : index
    %7 = vector.load %arg2[%c64_9, %c16] : memref<80x128xf32, #tpu.memory_space<vmem>>, vector<16x8xf32>
    %c64_10 = arith.constant 64 : index
    %c32_11 = arith.constant 32 : index
    %8 = vector.load %arg2[%c64_10, %c32_11] : memref<80x128xf32, #tpu.memory_space<vmem>>, vector<1x96xf32>
    %c65 = arith.constant 65 : index
    %c32_12 = arith.constant 32 : index
    %9 = vector.load %arg2[%c65, %c32_12] : memref<80x128xf32, #tpu.memory_space<vmem>>, vector<1x32xf32>
    %c65_13 = arith.constant 65 : index
    %c64_14 = arith.constant 64 : index
    %10 = vector.load %arg2[%c65_13, %c64_14] : memref<80x128xf32, #tpu.memory_space<vmem>>, vector<1x64xf32>
    %c66 = arith.constant 66 : index
    %c32_15 = arith.constant 32 : index
    %11 = vector.load %arg2[%c66, %c32_15] : memref<80x128xf32, #tpu.memory_space<vmem>>, vector<1x32xf32>
    %c66_16 = arith.constant 66 : index
    %c64_17 = arith.constant 64 : index
    %12 = vector.load %arg2[%c66_16, %c64_17] : memref<80x128xf32, #tpu.memory_space<vmem>>, vector<1x32xf32>
    %c66_18 = arith.constant 66 : index
    %c96_19 = arith.constant 96 : index
    %13 = vector.load %arg2[%c66_18, %c96_19] : memref<80x128xf32, #tpu.memory_space<vmem>>, vector<1x32xf32>
    %c67 = arith.constant 67 : index
    %c32_20 = arith.constant 32 : index
    %14 = vector.load %arg2[%c67, %c32_20] : memref<80x128xf32, #tpu.memory_space<vmem>>, vector<1x32xf32>
    %c67_21 = arith.constant 67 : index
    %c64_22 = arith.constant 64 : index
    %15 = vector.load %arg2[%c67_21, %c64_22] : memref<80x128xf32, #tpu.memory_space<vmem>>, vector<1x32xf32>
    %cst = arith.constant dense<0.000000e+00> : vector<16x96xf32>
    %16 = tpu.matmul %1, %2, %cst {dimension_numbers = #tpu.dot_dimension_numbers<[1], [0], [0], [1], [0, 0, 1, 1], [], []>} : vector<16x32xf32>, vector<32x96xf32>, vector<16x96xf32> -> vector<16x96xf32>
    %17 = vector.broadcast %8 : vector<1x96xf32> to vector<16x96xf32>
    %18 = arith.addf %16, %17 : vector<16x96xf32>
    %19 = vector.extract_strided_slice %18 {offsets = [0, 0], sizes = [16, 8], strides = [1, 1]} : vector<16x96xf32> to vector<16x8xf32>
    %20 = vector.extract_strided_slice %18 {offsets = [0, 8], sizes = [16, 8], strides = [1, 1]} : vector<16x96xf32> to vector<16x8xf32>
    %21 = vector.extract_strided_slice %18 {offsets = [0, 16], sizes = [16, 8], strides = [1, 1]} : vector<16x96xf32> to vector<16x8xf32>
    %22 = vector.extract_strided_slice %18 {offsets = [0, 24], sizes = [16, 8], strides = [1, 1]} : vector<16x96xf32> to vector<16x8xf32>
    %23 = vector.shape_cast %19 : vector<16x8xf32> to vector<1x16x8xf32>
    %24 = vector.shape_cast %20 : vector<16x8xf32> to vector<1x16x8xf32>
    %25 = vector.shape_cast %21 : vector<16x8xf32> to vector<1x16x8xf32>
    %26 = vector.shape_cast %22 : vector<16x8xf32> to vector<1x16x8xf32>
    %27 = tpu.concatenate %23, %24, %25, %26 in 0 : vector<1x16x8xf32>, vector<1x16x8xf32>, vector<1x16x8xf32>, vector<1x16x8xf32> -> vector<4x16x8xf32>
    %28 = vector.extract_strided_slice %18 {offsets = [0, 32], sizes = [16, 8], strides = [1, 1]} : vector<16x96xf32> to vector<16x8xf32>
    %29 = vector.extract_strided_slice %18 {offsets = [0, 40], sizes = [16, 8], strides = [1, 1]} : vector<16x96xf32> to vector<16x8xf32>
    %30 = vector.extract_strided_slice %18 {offsets = [0, 48], sizes = [16, 8], strides = [1, 1]} : vector<16x96xf32> to vector<16x8xf32>
    %31 = vector.extract_strided_slice %18 {offsets = [0, 56], sizes = [16, 8], strides = [1, 1]} : vector<16x96xf32> to vector<16x8xf32>
    %32 = vector.shape_cast %28 : vector<16x8xf32> to vector<1x16x8xf32>
    %33 = vector.shape_cast %29 : vector<16x8xf32> to vector<1x16x8xf32>
    %34 = vector.shape_cast %30 : vector<16x8xf32> to vector<1x16x8xf32>
    %35 = vector.shape_cast %31 : vector<16x8xf32> to vector<1x16x8xf32>
    %36 = tpu.concatenate %32, %33, %34, %35 in 0 : vector<1x16x8xf32>, vector<1x16x8xf32>, vector<1x16x8xf32>, vector<1x16x8xf32> -> vector<4x16x8xf32>
    %37 = vector.extract_strided_slice %18 {offsets = [0, 64], sizes = [16, 8], strides = [1, 1]} : vector<16x96xf32> to vector<16x8xf32>
    %38 = vector.extract_strided_slice %18 {offsets = [0, 72], sizes = [16, 8], strides = [1, 1]} : vector<16x96xf32> to vector<16x8xf32>
    %39 = vector.extract_strided_slice %18 {offsets = [0, 80], sizes = [16, 8], strides = [1, 1]} : vector<16x96xf32> to vector<16x8xf32>
    %40 = vector.extract_strided_slice %18 {offsets = [0, 88], sizes = [16, 8], strides = [1, 1]} : vector<16x96xf32> to vector<16x8xf32>
    %41 = vector.shape_cast %37 : vector<16x8xf32> to vector<1x16x8xf32>
    %42 = vector.shape_cast %38 : vector<16x8xf32> to vector<1x16x8xf32>
    %43 = vector.shape_cast %39 : vector<16x8xf32> to vector<1x16x8xf32>
    %44 = vector.shape_cast %40 : vector<16x8xf32> to vector<1x16x8xf32>
    %45 = tpu.concatenate %41, %42, %43, %44 in 0 : vector<1x16x8xf32>, vector<1x16x8xf32>, vector<1x16x8xf32>, vector<1x16x8xf32> -> vector<4x16x8xf32>
    "tpu.trace_start"() <{level = 10 : i32, message = "hqd,hkd->hqk"}> : () -> ()
    %cst_23 = arith.constant dense<0.000000e+00> : vector<4x16x16xf32>
    %46 = tpu.matmul %27, %36, %cst_23 {dimension_numbers = #tpu.dot_dimension_numbers<[2], [2], [1], [1], [0, 0, 0, 1, 1, 1], [0], [0]>} : vector<4x16x8xf32>, vector<4x16x8xf32>, vector<4x16x16xf32> -> vector<4x16x16xf32>
    "tpu.trace_stop"() : () -> ()
    %47 = vector.shape_cast %6 : vector<16x16xf32> to vector<1x16x16xf32>
    %48 = vector.broadcast %47 : vector<1x16x16xf32> to vector<4x16x16xf32>
    %49 = arith.addf %46, %48 : vector<4x16x16xf32>
    %cst_24 = arith.constant dense<0xFF800000> : vector<4x16xf32>
    %50 = vector.multi_reduction <maximumf>, %49, %cst_24 [2] : vector<4x16x16xf32> to vector<4x16xf32>
    %51 = vector.shape_cast %50 : vector<4x16xf32> to vector<4x16x1xf32>
    %52 = vector.broadcast %51 : vector<4x16x1xf32> to vector<4x16x16xf32>
    %53 = arith.subf %49, %52 : vector<4x16x16xf32>
    %54 = math.exp %53 : vector<4x16x16xf32>
    %cst_25 = arith.constant dense<0.000000e+00> : vector<4x16xf32>
    %55 = vector.multi_reduction <add>, %54, %cst_25 [2] : vector<4x16x16xf32> to vector<4x16xf32>
    %56 = vector.shape_cast %55 : vector<4x16xf32> to vector<4x16x1xf32>
    %57 = tpu.reciprocal %56 : vector<4x16x1xf32> -> vector<4x16x1xf32>
    %58 = vector.broadcast %57 : vector<4x16x1xf32> to vector<4x16x16xf32>
    %59 = arith.mulf %54, %58 : vector<4x16x16xf32>
    %60 = vector.extract_strided_slice %59 {offsets = [0, 0, 0], sizes = [4, 2, 16], strides = [1, 1, 1]} : vector<4x16x16xf32> to vector<4x2x16xf32>
    %cst_26 = arith.constant dense<0.000000e+00> : vector<2x16xf32>
    %61 = vector.multi_reduction <add>, %60, %cst_26 [0] : vector<4x2x16xf32> to vector<2x16xf32>
    %cst_27 = arith.constant dense<0.000000e+00> : vector<2x8xf32>
    %62 = tpu.matmul %61, %7, %cst_27 {dimension_numbers = #tpu.dot_dimension_numbers<[1], [0], [0], [1], [0, 0, 1, 1], [], []>} : vector<2x16xf32>, vector<16x8xf32>, vector<2x8xf32> -> vector<2x8xf32>
    %c0_28 = arith.constant 0 : index
    %c0_29 = arith.constant 0 : index
    %63 = vector.load %arg4[%c0_28, %c0_29] : memref<2x8xf32, #tpu.memory_space<vmem>>, vector<2x8xf32>
    tpu.vector_store %arg4[%c0_28, %c0_29], %62 {strides = array<i32>} : memref<2x8xf32, #tpu.memory_space<vmem>>, vector<2x8xf32>,
    "tpu.trace_start"() <{level = 10 : i32, message = "hqk,hkd->hqd"}> : () -> ()
    %cst_30 = arith.constant dense<0.000000e+00> : vector<4x16x8xf32>
    %64 = tpu.matmul %59, %45, %cst_30 {dimension_numbers = #tpu.dot_dimension_numbers<[2], [1], [1], [2], [0, 0, 0, 1, 1, 2], [0], [0]>} : vector<4x16x16xf32>, vector<4x16x8xf32>, vector<4x16x8xf32> -> vector<4x16x8xf32>
    "tpu.trace_stop"() : () -> ()
    %65 = vector.extract_strided_slice %64 {offsets = [0, 0, 0], sizes = [1, 16, 8], strides = [1, 1, 1]} : vector<4x16x8xf32> to vector<1x16x8xf32>
    %66 = vector.shape_cast %65 : vector<1x16x8xf32> to vector<16x8xf32>
    %67 = vector.extract_strided_slice %64 {offsets = [1, 0, 0], sizes = [1, 16, 8], strides = [1, 1, 1]} : vector<4x16x8xf32> to vector<1x16x8xf32>
    %68 = vector.shape_cast %67 : vector<1x16x8xf32> to vector<16x8xf32>
    %69 = vector.extract_strided_slice %64 {offsets = [2, 0, 0], sizes = [1, 16, 8], strides = [1, 1, 1]} : vector<4x16x8xf32> to vector<1x16x8xf32>
    %70 = vector.shape_cast %69 : vector<1x16x8xf32> to vector<16x8xf32>
    %71 = vector.extract_strided_slice %64 {offsets = [3, 0, 0], sizes = [1, 16, 8], strides = [1, 1, 1]} : vector<4x16x8xf32> to vector<1x16x8xf32>
    %72 = vector.shape_cast %71 : vector<1x16x8xf32> to vector<16x8xf32>
    %73 = tpu.concatenate %66, %68, %70, %72 in 1 : vector<16x8xf32>, vector<16x8xf32>, vector<16x8xf32>, vector<16x8xf32> -> vector<16x32xf32>
    %cst_31 = arith.constant dense<0.000000e+00> : vector<16x32xf32>
    %74 = tpu.matmul %73, %3, %cst_31 {dimension_numbers = #tpu.dot_dimension_numbers<[1], [0], [0], [1], [0, 0, 1, 1], [], []>} : vector<16x32xf32>, vector<32x32xf32>, vector<16x32xf32> -> vector<16x32xf32>
    %75 = vector.broadcast %9 : vector<1x32xf32> to vector<16x32xf32>
    %76 = arith.addf %74, %75 : vector<16x32xf32>
    %77 = arith.addf %1, %76 : vector<16x32xf32>
    %cst_32 = arith.constant dense<0.000000e+00> : vector<16xf32>
    %78 = vector.multi_reduction <add>, %77, %cst_32 [1] : vector<16x32xf32> to vector<16xf32>
    %79 = vector.shape_cast %78 : vector<16xf32> to vector<16x1xf32>
    %cst_33 = arith.constant 3.200000e+01 : f32
    %80 = vector.broadcast %cst_33 : f32 to vector<16x1xf32>
    %81 = arith.divf %79, %80 : vector<16x1xf32>
    %82 = vector.broadcast %81 : vector<16x1xf32> to vector<16x32xf32>
    %83 = arith.subf %77, %82 : vector<16x32xf32>
    %84 = arith.mulf %83, %83 : vector<16x32xf32>
    %cst_34 = arith.constant dense<0.000000e+00> : vector<16xf32>
    %85 = vector.multi_reduction <add>, %84, %cst_34 [1] : vector<16x32xf32> to vector<16xf32>
    %86 = vector.shape_cast %85 : vector<16xf32> to vector<16x1xf32>
    %cst_35 = arith.constant 3.200000e+01 : f32
    %87 = vector.broadcast %cst_35 : f32 to vector<16x1xf32>
    %88 = arith.divf %86, %87 : vector<16x1xf32>
    %89 = vector.broadcast %81 : vector<16x1xf32> to vector<16x32xf32>
    %90 = arith.subf %77, %89 : vector<16x32xf32>
    %cst_36 = arith.constant 9.99999974E-6 : f32
    %91 = vector.broadcast %cst_36 : f32 to vector<16x1xf32>
    %92 = arith.addf %88, %91 : vector<16x1xf32>
    %93 = math.rsqrt %92 : vector<16x1xf32>
    %94 = vector.broadcast %93 : vector<16x1xf32> to vector<16x32xf32>
    %95 = arith.mulf %90, %94 : vector<16x32xf32>
    %96 = vector.broadcast %12 : vector<1x32xf32> to vector<16x32xf32>
    %97 = arith.mulf %95, %96 : vector<16x32xf32>
    %98 = vector.broadcast %13 : vector<1x32xf32> to vector<16x32xf32>
    %99 = arith.addf %97, %98 : vector<16x32xf32>
    %cst_37 = arith.constant dense<0.000000e+00> : vector<16x64xf32>
    %100 = tpu.matmul %99, %4, %cst_37 {dimension_numbers = #tpu.dot_dimension_numbers<[1], [0], [0], [1], [0, 0, 1, 1], [], []>} : vector<16x32xf32>, vector<32x64xf32>, vector<16x64xf32> -> vector<16x64xf32>
    %101 = vector.broadcast %10 : vector<1x64xf32> to vector<16x64xf32>
    %102 = arith.addf %100, %101 : vector<16x64xf32>
    %cst_38 = arith.constant 0.000000e+00 : f32
    %103 = vector.broadcast %cst_38 : f32 to vector<16x64xf32>
    %104 = arith.maximumf %102, %103 : vector<16x64xf32>
    "tpu.trace_start"() <{level = 10 : i32, message = "sf,ef->se"}> : () -> ()
    %cst_39 = arith.constant dense<0.000000e+00> : vector<16x32xf32>
    %105 = tpu.matmul %104, %5, %cst_39 {dimension_numbers = #tpu.dot_dimension_numbers<[1], [1], [0], [0], [0, 0, 1, 0], [], []>} : vector<16x64xf32>, vector<32x64xf32>, vector<16x32xf32> -> vector<16x32xf32>
    "tpu.trace_stop"() : () -> ()
    %106 = vector.broadcast %11 : vector<1x32xf32> to vector<16x32xf32>
    %107 = arith.addf %105, %106 : vector<16x32xf32>
    %108 = arith.addf %99, %107 : vector<16x32xf32>
    %cst_40 = arith.constant dense<0.000000e+00> : vector<16xf32>
    %109 = vector.multi_reduction <add>, %108, %cst_40 [1] : vector<16x32xf32> to vector<16xf32>
    %110 = vector.shape_cast %109 : vector<16xf32> to vector<16x1xf32>
    %cst_41 = arith.constant 3.200000e+01 : f32
    %111 = vector.broadcast %cst_41 : f32 to vector<16x1xf32>
    %112 = arith.divf %110, %111 : vector<16x1xf32>
    %113 = vector.broadcast %112 : vector<16x1xf32> to vector<16x32xf32>
    %114 = arith.subf %108, %113 : vector<16x32xf32>
    %115 = arith.mulf %114, %114 : vector<16x32xf32>
    %cst_42 = arith.constant dense<0.000000e+00> : vector<16xf32>
    %116 = vector.multi_reduction <add>, %115, %cst_42 [1] : vector<16x32xf32> to vector<16xf32>
    %117 = vector.shape_cast %116 : vector<16xf32> to vector<16x1xf32>
    %cst_43 = arith.constant 3.200000e+01 : f32
    %118 = vector.broadcast %cst_43 : f32 to vector<16x1xf32>
    %119 = arith.divf %117, %118 : vector<16x1xf32>
    %120 = vector.broadcast %112 : vector<16x1xf32> to vector<16x32xf32>
    %121 = arith.subf %108, %120 : vector<16x32xf32>
    %cst_44 = arith.constant 9.99999974E-6 : f32
    %122 = vector.broadcast %cst_44 : f32 to vector<16x1xf32>
    %123 = arith.addf %119, %122 : vector<16x1xf32>
    %124 = math.rsqrt %123 : vector<16x1xf32>
    %125 = vector.broadcast %124 : vector<16x1xf32> to vector<16x32xf32>
    %126 = arith.mulf %121, %125 : vector<16x32xf32>
    %127 = vector.broadcast %14 : vector<1x32xf32> to vector<16x32xf32>
    %128 = arith.mulf %126, %127 : vector<16x32xf32>
    %129 = vector.broadcast %15 : vector<1x32xf32> to vector<16x32xf32>
    %130 = arith.addf %128, %129 : vector<16x32xf32>
    %131 = vector.shape_cast %130 : vector<16x32xf32> to vector<8x2x32xf32>
    %c0_45 = arith.constant 0 : index
    %c0_46 = arith.constant 0 : index
    %c0_47 = arith.constant 0 : index
    %132 = vector.load %arg3[%c0_45, %c0_46, %c0_47] : memref<8x2x32xf32, #tpu.memory_space<vmem>>, vector<8x2x32xf32>
    tpu.vector_store %arg3[%c0_45, %c0_46, %c0_47], %131 {strides = array<i32>} : memref<8x2x32xf32, #tpu.memory_space<vmem>>, vector<8x2x32xf32>,
    return
  }
  func.func @transform_0(%arg0: i32) -> (i32, i32, i32) {
    %c0_i32 = arith.constant 0 : i32
    %c0_i32_0 = arith.constant 0 : i32
    %c0_i32_1 = arith.constant 0 : i32
    %c0_i32_2 = arith.constant 0 : i32
    return %c0_i32, %c0_i32_0, %c0_i32_1 : i32, i32, i32
  }
  func.func @transform_1(%arg0: i32) -> (i32, i32) {
    %c0_i32 = arith.constant 0 : i32
    %c0_i32_0 = arith.constant 0 : i32
    %c0_i32_1 = arith.constant 0 : i32
    return %c0_i32, %c0_i32_0 : i32, i32
  }
  func.func @transform_2(%arg0: i32) -> (i32, i32, i32) {
    %c0_i32 = arith.constant 0 : i32
    %c0_i32_0 = arith.constant 0 : i32
    %c0_i32_1 = arith.constant 0 : i32
    %c0_i32_2 = arith.constant 0 : i32
    return %c0_i32, %c0_i32_0, %c0_i32_1 : i32, i32, i32
  }
  func.func @transform_3(%arg0: i32) -> (i32, i32) {
    %c0_i32 = arith.constant 0 : i32
    %c0_i32_0 = arith.constant 0 : i32
    %c0_i32_1 = arith.constant 0 : i32
    return %c0_i32, %c0_i32_0 : i32, i32
  }
}

</mosaic_0001>

<llo_original>
// kernel: tpu_custom_call.1
$region0: #{tpu_custom_call.1}
  #allocation0 [shape = 'u32[]', space=smem, size = 0x4, offset = 0x4, fixed_abs, tag = 'smem constant byte address 0x4 - core index']
  #allocation1 [shape = 'u32[144,128]{1,0:T(1,128)}', space=vmem, size = 0x12000, scoped, tag = 'internal scratch']
  %s0 = inlined_call_operand.hbm [shape: f32[8,2,32], index: 0, kind: input, shape index: {}]
  %s1 = inlined_call_operand.hbm [shape: f32[80,128], index: 1, kind: input, shape index: {}]
  %s2 = inlined_call_operand.hbm [shape: f32[8,2,32], index: 2, kind: output, shape index: {0}]
  %s3 = inlined_call_operand.hbm [shape: f32[2,8], index: 3, kind: output, shape index: {1}]
  %4 = xla_tuple %s2, %s3
  %s5 = sld [smem:[#allocation0]]
  $region34: #{tpu_custom_call.1} parent=0
    _
  %s7 = ssub.s32 1, %s5
  %s8 = scalar_select 0, %s7, %s5
  $region1: #{tpu_custom_call.1} parent=0
    #allocation2 [shape = 'u8[8192]{0}', space=vmem, size = 0x2000, scoped, tag = 'input window, operand 0, single buffered']
    #allocation3 [shape = 's32[1]{0}', space=sflag, size = 0x4, scoped, tag = 'scoped memory for tpu_custom_call.1']
    #allocation4 [shape = 's32[1]{0}', space=sflag, size = 0x4, scoped, tag = 'scoped memory for tpu_custom_call.1']
    #allocation5 [shape = 'u8[40960]{0}', space=vmem, size = 0xa000, scoped, tag = 'input window, operand 1, single buffered']
    #allocation6 [shape = 's32[1]{0}', space=sflag, size = 0x4, scoped, tag = 'scoped memory for tpu_custom_call.1']
    #allocation7 [shape = 'u8[8192]{0}', space=vmem, size = 0x2000, scoped, tag = 'output window, operand 0, single buffered']
    #allocation8 [shape = 'u8[1024]{0}', space=vmem, size = 0x400, scoped, tag = 'output window, operand 1, single buffered']
    #allocation9 [shape = 's32[1]{0}', space=sflag, size = 0x4, scoped, tag = 'scoped memory for tpu_custom_call.1']
    %9 = vsyncpa [#allocation3], 0
    %10 = vsyncpa [#allocation6], 0
    %11 = vsyncpa [#allocation4], 0
    %12 = vsyncpa [#allocation9], 0
    // Predicated region
    $region2: #{tpu_custom_call.1} parent=1 // pred_check
      _
    $region3: #{tpu_custom_call.1} parent=1 // pred_check_branch
      %14 = sbr.rel (0) target = $region5
    $region4: #{tpu_custom_call.1} parent=1 // pred_region
      %s16 = ssub.s32 256, 256
      %17 = vsyncadd [#allocation3], %s16
      %s18 = sshll.u32 [#allocation2], 4
      %s19 = int_to_ptr.vmem [resolvable:$true] %s18
      %24 = dma.hbm_to_vmem [thread:$0]  %s0, 256, %s19, [#allocation3], 32, 32, 2
    $region5: #{tpu_custom_call.1} parent=1 // pred_fallthru
      _
    // Predicated region
    $region6: #{tpu_custom_call.1} parent=1 // pred_check
      _
    $region7: #{tpu_custom_call.1} parent=1 // pred_check_branch
      %26 = sbr.rel (0) target = $region9
    $region8: #{tpu_custom_call.1} parent=1 // pred_region
      %s28 = ssub.s32 1280, 1280
      %29 = vsyncadd [#allocation6], %s28
      %s30 = sshll.u32 [#allocation5], 4
      %s31 = int_to_ptr.vmem [resolvable:$true] %s30
      %36 = dma.hbm_to_vmem [thread:$0]  %s1, 1280, %s31, [#allocation6], 128, 128, 8
    $region9: #{tpu_custom_call.1} parent=1 // pred_fallthru
      _
    // Predicated region
    $region10: #{tpu_custom_call.1} parent=1 // pred_check
      _
    $region11: #{tpu_custom_call.1} parent=1 // pred_check_branch
      %38 = sbr.rel (0) target = $region13
    $region12: #{tpu_custom_call.1} parent=1 // pred_region
      %39 = dma.done [#allocation3], 256
    $region13: #{tpu_custom_call.1} parent=1 // pred_fallthru
      _
    // Predicated region
    $region14: #{tpu_custom_call.1} parent=1 // pred_check
      _
    $region15: #{tpu_custom_call.1} parent=1 // pred_check_branch
      %41 = sbr.rel (0) target = $region17
    $region16: #{tpu_custom_call.1} parent=1 // pred_region
      %42 = dma.done [#allocation6], 1280
    $region17: #{tpu_custom_call.1} parent=1 // pred_fallthru
      _
    %v43 = vld [vmem:[#allocation2] sm:$0x3]
    %v44 = vld [vmem:[#allocation2 + $0x2] sm:$0x3]
    %v45 = vld [vmem:[#allocation2 + $0x4] sm:$0x3]
    %v46 = vld [vmem:[#allocation2 + $0x6] sm:$0x3]
    %v47 = vld [vmem:[#allocation2 + $0x8] sm:$0x3]
    %v48 = vld [vmem:[#allocation2 + $0xa] sm:$0x3]
    %v49 = vld [vmem:[#allocation2 + $0xc] sm:$0x3]
    %v50 = vld [vmem:[#allocation2 + $0xe] sm:$0x3]
    %v51 = vld [vmem:[#allocation5] sm:$0xff]
    %v52 = vld [vmem:[#allocation5 + $0x8] sm:$0xff]
    %v53 = vld [vmem:[#allocation5 + $0x10] sm:$0xff]
    %v54 = vld [vmem:[#allocation5 + $0x18] sm:$0xff]
    %v55 = vld [vmem:[#allocation5 + $0x20] sm:$0xff]
    %v56 = vld [vmem:[#allocation5 + $0x28] sm:$0xff]
    %v57 = vld [vmem:[#allocation5 + $0x30] sm:$0xff]
    %v58 = vld [vmem:[#allocation5 + $0x38] sm:$0xff]
    %v59 = vld [vmem:[#allocation5 + $0x40] sm:$0xff]
    %v60 = vld [vmem:[#allocation5 + $0x48] sm:$0xff]
    %v61 = vld [vmem:[#allocation5 + $0x40] sm:$0x1]
    %v62 = vld [vmem:[#allocation5 + $0x41] sm:$0x1]
    %v63 = vld [vmem:[#allocation5 + $0x42] sm:$0x1]
    %v64 = vld [vmem:[#allocation5 + $0x43] sm:$0x1]
    %v65 = vlaneseq
    %v66 = vshrl.u32 %v65, 7
    %v67 = vsub.s32 0, %v66
    %v68 = vrot.slane %v61, %v67
    %v77 = vcombine.low %v43, %v44
    %v78 = vcombine.low %v45, %v46
    %v80 = vunpack.c.l.s4 1983009808
    %v81 = vunpack.c.0.s8 %v80
    %v82 = vlaneseq
    %v83 = vshrl.u32 %v82, 7
    %v84 = vsub.s32 %v81, %v83
    %v85 = vrot.slane %v77, %v84
    %v87 = vunpack.c.l.s4 1983009808
    %v88 = vunpack.c.0.s8 %v87
    %v89 = vlaneseq
    %v90 = vshrl.u32 %v89, 7
    %v91 = vsub.s32 %v88, %v90
    %v92 = vrot.slane %v78, %v91
    %v93 = vcombine.low %v85, %v92
    %v94 = vcombine.low %v47, %v48
    %v95 = vcombine.low %v49, %v50
    %v97 = vunpack.c.l.s4 1983009808
    %v98 = vunpack.c.0.s8 %v97
    %v99 = vlaneseq
    %v100 = vshrl.u32 %v99, 7
    %v101 = vsub.s32 %v98, %v100
    %v102 = vrot.slane %v94, %v101
    %v104 = vunpack.c.l.s4 1983009808
    %v105 = vunpack.c.0.s8 %v104
    %v106 = vlaneseq
    %v107 = vshrl.u32 %v106, 7
    %v108 = vsub.s32 %v105, %v107
    %v109 = vrot.slane %v95, %v108
    %v110 = vcombine.low %v102, %v109
    %112 = vrot.lane.b32.xlu0 %v68, 96
    %v113 = vpop.permute.xlu0 %112
    %vm115 = vcmask 261120
    %v116 = vsel %vm115, %v93, 0
    %v118 = vsel %vm115, %v110, 0
    %120 = vmatprep.subr.mxu0 0.0
    %121 = vmatpush1.msra.mxu0 %v51
    %122 = vmatprep.subr.mxu0 0.0
    %123 = vmatpush1.msra.mxu0 %v52
    %124 = vmatprep.subr.mxu0 0.0
    %125 = vmatpush1.msra.mxu0 %v53
    %126 = vmatprep.subr.mxu0 0.0
    %127 = vmatpush1.msra.mxu0 %v54
    %128 = vmatprep.subr.mxu0 0.0
    %129 = vmatpush1.msra.mxu0 0.0
    %130 = vmatprep.subr.mxu0 0.0
    %131 = vmatpush1.msra.mxu0 0.0
    %132 = vmatprep.subr.mxu0 0.0
    %133 = vmatpush1.msra.mxu0 0.0
    %134 = vmatprep.subr.mxu0 0.0
    %135 = vmatpush1.msra.mxu0 0.0
    %136 = vmatprep.subr.mxu0 0.0
    %137 = vmatpush1.msra.mxu0 0.0
    %138 = vmatprep.subr.mxu0 0.0
    %139 = vmatpush1.msra.mxu0 0.0
    %140 = vmatprep.subr.mxu0 0.0
    %141 = vmatpush1.msra.mxu0 0.0
    %142 = vmatprep.subr.mxu0 0.0
    %143 = vmatpush1.msra.mxu0 0.0
    %144 = vmatprep.subr.mxu0 0.0
    %145 = vmatpush1.msra.mxu0 0.0
    %146 = vmatprep.subr.mxu0 0.0
    %147 = vmatpush1.msra.mxu0 0.0
    %148 = vmatprep.subr.mxu0 0.0
    %149 = vmatpush1.msra.mxu0 0.0
    %150 = vmatprep.subr.mxu0 0.0
    %151 = vmatpush1.msra.mxu0 0.0
    %152 = vmatprep.subr.mxu0 0.0
    %153 = vmatpush1.msra.mxu0 0.0
    %154 = vmatprep.subr.mxu0 0.0
    %155 = vmatpush1.msra.mxu0 0.0
    %156 = vmatprep.subr.mxu0 0.0
    %157 = vmatpush1.msra.mxu0 0.0
    %158 = vmatprep.subr.mxu0 0.0
    %159 = vmatpush1.msra.mxu0 0.0
    %160 = vmatprep.subr.mxu0 0.0
    %161 = vmatpush1.msra.mxu0 0.0
    %162 = vmatprep.subr.mxu0 0.0
    %163 = vmatpush1.msra.mxu0 0.0
    %164 = vmatprep.subr.mxu0 0.0
    %165 = vmatpush1.msra.mxu0 0.0
    %166 = vmatprep.subr.mxu0 0.0
    %167 = vmatpush1.msra.mxu0 0.0
    %168 = vmatprep.subr.mxu0 0.0
    %169 = vmatpush1.msra.mxu0 0.0
    %170 = vmatprep.subr.mxu0 0.0
    %171 = vmatpush1.msra.mxu0 0.0
    %172 = vmatprep.subr.mxu0 0.0
    %173 = vmatpush1.msra.mxu0 0.0
    %174 = vmatprep.subr.mxu0 0.0
    %175 = vmatpush1.msra.mxu0 0.0
    %176 = vmatprep.subr.mxu0 0.0
    %177 = vmatpush1.msra.mxu0 0.0
    %178 = vmatprep.subr.mxu0 0.0
    %179 = vmatpush1.msra.mxu0 0.0
    %180 = vmatprep.subr.mxu0 0.0
    %181 = vmatpush1.msra.mxu0 0.0
    %182 = vmatprep.subr.mxu0 0.0
    %183 = vmatpush1.msra.mxu0 0.0
    %184 = vmatprep.mubr.f32.mxu0 0.0
    %185 = vmatmul.mubr.f32.gmra.mrb[0].mxu0 %v116
    %v186 = vpop.f32.mrb[0].mxu0
    %v187 = vadd.f32 %v113, %v186
    %v188 = vpop.f32.mrb[0].mxu0
    %189 = vmatprep.mubr.f32.mxu0 0.0
    %190 = vmatmul.mubr.f32.gmra.mrb[0].mxu0 %v118
    %v191 = vpop.f32.mrb[0].mxu0
    %v192 = vadd.f32 %v113, %v191
    %v193 = vpop.f32.mrb[0].mxu0
    %194 = vdwg.mxu0
    %197 = vrot.lane.b32.xlu0 %v187, 120
    %v198 = vpop.permute.xlu0 %197
    %199 = vrot.lane.b32.xlu0 %v192, 120
    %v200 = vpop.permute.xlu0 %199
    %201 = vrot.lane.b32.xlu0 %v187, 112
    %v202 = vpop.permute.xlu0 %201
    %203 = vrot.lane.b32.xlu0 %v192, 112
    %v204 = vpop.permute.xlu0 %203
    %205 = vrot.lane.b32.xlu0 %v187, 104
    %v206 = vpop.permute.xlu0 %205
    %207 = vrot.lane.b32.xlu0 %v192, 104
    %v208 = vpop.permute.xlu0 %207
    %209 = vrot.lane.b32.xlu0 %v187, 96
    %v210 = vpop.permute.xlu0 %209
    %211 = vrot.lane.b32.xlu0 %v192, 96
    %v212 = vpop.permute.xlu0 %211
    %vm213 = vcmask 64512
    %v214 = vsel %vm213, %v187, 0
    %v216 = vsel %vm213, %v192, 0
    %v218 = vsel %vm213, %v210, 0
    %v220 = vsel %vm213, %v212, 0
    %222 = vmatprep.subr.mxu0 0.0
    %223 = vmatpush1.xpose.msra.mxu0 %v218
    %224 = vmatprep.subr.mxu0 0.0
    %225 = vmatpush1.xpose.msra.mxu0 %v220
    %226 = vmatprep.subr.mxu0 0.0
    %227 = vmatpush1.xpose.msra.mxu0 0.0
    %228 = vmatprep.subr.mxu0 0.0
    %229 = vmatpush1.xpose.msra.mxu0 0.0
    %230 = vmatprep.subr.mxu0 0.0
    %231 = vmatpush1.xpose.msra.mxu0 0.0
    %232 = vmatprep.subr.mxu0 0.0
    %233 = vmatpush1.xpose.msra.mxu0 0.0
    %234 = vmatprep.subr.mxu0 0.0
    %235 = vmatpush1.xpose.msra.mxu0 0.0
    %236 = vmatprep.subr.mxu0 0.0
    %237 = vmatpush1.xpose.msra.mxu0 0.0
    %238 = vmatprep.subr.mxu0 0.0
    %239 = vmatpush1.xpose.msra.mxu0 0.0
    %240 = vmatprep.subr.mxu0 0.0
    %241 = vmatpush1.xpose.msra.mxu0 0.0
    %242 = vmatprep.subr.mxu0 0.0
    %243 = vmatpush1.xpose.msra.mxu0 0.0
    %244 = vmatprep.subr.mxu0 0.0
    %245 = vmatpush1.xpose.msra.mxu0 0.0
    %246 = vmatprep.subr.mxu0 0.0
    %247 = vmatpush1.xpose.msra.mxu0 0.0
    %248 = vmatprep.subr.mxu0 0.0
    %249 = vmatpush1.xpose.msra.mxu0 0.0
    %250 = vmatprep.subr.mxu0 0.0
    %251 = vmatpush1.xpose.msra.mxu0 0.0
    %252 = vmatprep.subr.mxu0 0.0
    %253 = vmatpush1.xpose.msra.mxu0 0.0
    %254 = vmatprep.subr.mxu0 0.0
    %255 = vmatpush1.xpose.msra.mxu0 0.0
    %256 = vmatprep.subr.mxu0 0.0
    %257 = vmatpush1.xpose.msra.mxu0 0.0
    %258 = vmatprep.subr.mxu0 0.0
    %259 = vmatpush1.xpose.msra.mxu0 0.0
    %260 = vmatprep.subr.mxu0 0.0
    %261 = vmatpush1.xpose.msra.mxu0 0.0
    %262 = vmatprep.subr.mxu0 0.0
    %263 = vmatpush1.xpose.msra.mxu0 0.0
    %264 = vmatprep.subr.mxu0 0.0
    %265 = vmatpush1.xpose.msra.mxu0 0.0
    %266 = vmatprep.subr.mxu0 0.0
    %267 = vmatpush1.xpose.msra.mxu0 0.0
    %268 = vmatprep.subr.mxu0 0.0
    %269 = vmatpush1.xpose.msra.mxu0 0.0
    %270 = vmatprep.subr.mxu0 0.0
    %271 = vmatpush1.xpose.msra.mxu0 0.0
    %272 = vmatprep.subr.mxu0 0.0
    %273 = vmatpush1.xpose.msra.mxu0 0.0
    %274 = vmatprep.subr.mxu0 0.0
    %275 = vmatpush1.xpose.msra.mxu0 0.0
    %276 = vmatprep.subr.mxu0 0.0
    %277 = vmatpush1.xpose.msra.mxu0 0.0
    %278 = vmatprep.subr.mxu0 0.0
    %279 = vmatpush1.xpose.msra.mxu0 0.0
    %280 = vmatprep.subr.mxu0 0.0
    %281 = vmatpush1.xpose.msra.mxu0 0.0
    %282 = vmatprep.subr.mxu0 0.0
    %283 = vmatpush1.xpose.msra.mxu0 0.0
    %284 = vmatprep.subr.mxu0 0.0
    %285 = vmatpush1.xpose.msra.mxu0 0.0
    %286 = vmatprep.mubr.f32.mxu0 0.0
    %287 = vmatmul.mubr.f32.gmra.mrb[0].mxu0 %v214
    %v288 = vpop.f32.mrb[0].mxu0
    %v289 = vadd.f32 %v59, %v288
    %v290 = vpop.f32.mrb[0].mxu0
    %291 = vmatprep.mubr.f32.mxu0 0.0
    %292 = vmatmul.mubr.f32.gmra.mrb[0].mxu0 %v216
    %v293 = vpop.f32.mrb[0].mxu0
    %v294 = vadd.f32 %v60, %v293
    %v295 = vpop.f32.mrb[0].mxu0
    %296 = vdwg.mxu0
    %297 = vrot.lane.b32.xlu0 %v198, 96
    %v298 = vpop.permute.xlu0 %297
    %299 = vrot.lane.b32.xlu0 %v200, 96
    %v300 = vpop.permute.xlu0 %299
    %v301 = vsel %vm213, %v198, 0
    %v303 = vsel %vm213, %v200, 0
    %v305 = vsel %vm213, %v298, 0
    %v307 = vsel %vm213, %v300, 0
    %309 = vmatprep.subr.mxu0 0.0
    %310 = vmatpush1.xpose.msra.mxu0 %v305
    %311 = vmatprep.subr.mxu0 0.0
    %312 = vmatpush1.xpose.msra.mxu0 %v307
    %313 = vmatprep.subr.mxu0 0.0
    %314 = vmatpush1.xpose.msra.mxu0 0.0
    %315 = vmatprep.subr.mxu0 0.0
    %316 = vmatpush1.xpose.msra.mxu0 0.0
    %317 = vmatprep.subr.mxu0 0.0
    %318 = vmatpush1.xpose.msra.mxu0 0.0
    %319 = vmatprep.subr.mxu0 0.0
    %320 = vmatpush1.xpose.msra.mxu0 0.0
    %321 = vmatprep.subr.mxu0 0.0
    %322 = vmatpush1.xpose.msra.mxu0 0.0
    %323 = vmatprep.subr.mxu0 0.0
    %324 = vmatpush1.xpose.msra.mxu0 0.0
    %325 = vmatprep.subr.mxu0 0.0
    %326 = vmatpush1.xpose.msra.mxu0 0.0
    %327 = vmatprep.subr.mxu0 0.0
    %328 = vmatpush1.xpose.msra.mxu0 0.0
    %329 = vmatprep.subr.mxu0 0.0
    %330 = vmatpush1.xpose.msra.mxu0 0.0
    %331 = vmatprep.subr.mxu0 0.0
    %332 = vmatpush1.xpose.msra.mxu0 0.0
    %333 = vmatprep.subr.mxu0 0.0
    %334 = vmatpush1.xpose.msra.mxu0 0.0
    %335 = vmatprep.subr.mxu0 0.0
    %336 = vmatpush1.xpose.msra.mxu0 0.0
    %337 = vmatprep.subr.mxu0 0.0
    %338 = vmatpush1.xpose.msra.mxu0 0.0
    %339 = vmatprep.subr.mxu0 0.0
    %340 = vmatpush1.xpose.msra.mxu0 0.0
    %341 = vmatprep.subr.mxu0 0.0
    %342 = vmatpush1.xpose.msra.mxu0 0.0
    %343 = vmatprep.subr.mxu0 0.0
    %344 = vmatpush1.xpose.msra.mxu0 0.0
    %345 = vmatprep.subr.mxu0 0.0
    %346 = vmatpush1.xpose.msra.mxu0 0.0
    %347 = vmatprep.subr.mxu0 0.0
    %348 = vmatpush1.xpose.msra.mxu0 0.0
    %349 = vmatprep.subr.mxu0 0.0
    %350 = vmatpush1.xpose.msra.mxu0 0.0
    %351 = vmatprep.subr.mxu0 0.0
    %352 = vmatpush1.xpose.msra.mxu0 0.0
    %353 = vmatprep.subr.mxu0 0.0
    %354 = vmatpush1.xpose.msra.mxu0 0.0
    %355 = vmatprep.subr.mxu0 0.0
    %356 = vmatpush1.xpose.msra.mxu0 0.0
    %357 = vmatprep.subr.mxu0 0.0
    %358 = vmatpush1.xpose.msra.mxu0 0.0
    %359 = vmatprep.subr.mxu0 0.0
    %360 = vmatpush1.xpose.msra.mxu0 0.0
    %361 = vmatprep.subr.mxu0 0.0
    %362 = vmatpush1.xpose.msra.mxu0 0.0
    %363 = vmatprep.subr.mxu0 0.0
    %364 = vmatpush1.xpose.msra.mxu0 0.0
    %365 = vmatprep.subr.mxu0 0.0
    %366 = vmatpush1.xpose.msra.mxu0 0.0
    %367 = vmatprep.subr.mxu0 0.0
    %368 = vmatpush1.xpose.msra.mxu0 0.0
    %369 = vmatprep.subr.mxu0 0.0
    %370 = vmatpush1.xpose.msra.mxu0 0.0
    %371 = vmatprep.subr.mxu0 0.0
    %372 = vmatpush1.xpose.msra.mxu0 0.0
    %373 = vmatprep.mubr.f32.mxu0 0.0
    %374 = vmatmul.mubr.f32.gmra.mrb[0].mxu0 %v301
    %v375 = vpop.f32.mrb[0].mxu0
    %v376 = vadd.f32 %v59, %v375
    %v377 = vpop.f32.mrb[0].mxu0
    %378 = vmatprep.mubr.f32.mxu0 0.0
    %379 = vmatmul.mubr.f32.gmra.mrb[0].mxu0 %v303
    %v380 = vpop.f32.mrb[0].mxu0
    %v381 = vadd.f32 %v60, %v380
    %v382 = vpop.f32.mrb[0].mxu0
    %383 = vdwg.mxu0
    %384 = vrot.lane.b32.xlu0 %v202, 96
    %v385 = vpop.permute.xlu0 %384
    %386 = vrot.lane.b32.xlu0 %v204, 96
    %v387 = vpop.permute.xlu0 %386
    %v388 = vsel %vm213, %v202, 0
    %v390 = vsel %vm213, %v204, 0
    %v392 = vsel %vm213, %v385, 0
    %v394 = vsel %vm213, %v387, 0
    %396 = vmatprep.subr.mxu0 0.0
    %397 = vmatpush1.xpose.msra.mxu0 %v392
    %398 = vmatprep.subr.mxu0 0.0
    %399 = vmatpush1.xpose.msra.mxu0 %v394
    %400 = vmatprep.subr.mxu0 0.0
    %401 = vmatpush1.xpose.msra.mxu0 0.0
    %402 = vmatprep.subr.mxu0 0.0
    %403 = vmatpush1.xpose.msra.mxu0 0.0
    %404 = vmatprep.subr.mxu0 0.0
    %405 = vmatpush1.xpose.msra.mxu0 0.0
    %406 = vmatprep.subr.mxu0 0.0
    %407 = vmatpush1.xpose.msra.mxu0 0.0
    %408 = vmatprep.subr.mxu0 0.0
    %409 = vmatpush1.xpose.msra.mxu0 0.0
    %410 = vmatprep.subr.mxu0 0.0
    %411 = vmatpush1.xpose.msra.mxu0 0.0
    %412 = vmatprep.subr.mxu0 0.0
    %413 = vmatpush1.xpose.msra.mxu0 0.0
    %414 = vmatprep.subr.mxu0 0.0
    %415 = vmatpush1.xpose.msra.mxu0 0.0
    %416 = vmatprep.subr.mxu0 0.0
    %417 = vmatpush1.xpose.msra.mxu0 0.0
    %418 = vmatprep.subr.mxu0 0.0
    %419 = vmatpush1.xpose.msra.mxu0 0.0
    %420 = vmatprep.subr.mxu0 0.0
    %421 = vmatpush1.xpose.msra.mxu0 0.0
    %422 = vmatprep.subr.mxu0 0.0
    %423 = vmatpush1.xpose.msra.mxu0 0.0
    %424 = vmatprep.subr.mxu0 0.0
    %425 = vmatpush1.xpose.msra.mxu0 0.0
    %426 = vmatprep.subr.mxu0 0.0
    %427 = vmatpush1.xpose.msra.mxu0 0.0
    %428 = vmatprep.subr.mxu0 0.0
    %429 = vmatpush1.xpose.msra.mxu0 0.0
    %430 = vmatprep.subr.mxu0 0.0
    %431 = vmatpush1.xpose.msra.mxu0 0.0
    %432 = vmatprep.subr.mxu0 0.0
    %433 = vmatpush1.xpose.msra.mxu0 0.0
    %434 = vmatprep.subr.mxu0 0.0
    %435 = vmatpush1.xpose.msra.mxu0 0.0
    %436 = vmatprep.subr.mxu0 0.0
    %437 = vmatpush1.xpose.msra.mxu0 0.0
    %438 = vmatprep.subr.mxu0 0.0
    %439 = vmatpush1.xpose.msra.mxu0 0.0
    %440 = vmatprep.subr.mxu0 0.0
    %441 = vmatpush1.xpose.msra.mxu0 0.0
    %442 = vmatprep.subr.mxu0 0.0
    %443 = vmatpush1.xpose.msra.mxu0 0.0
    %444 = vmatprep.subr.mxu0 0.0
    %445 = vmatpush1.xpose.msra.mxu0 0.0
    %446 = vmatprep.subr.mxu0 0.0
    %447 = vmatpush1.xpose.msra.mxu0 0.0
    %448 = vmatprep.subr.mxu0 0.0
    %449 = vmatpush1.xpose.msra.mxu0 0.0
    %450 = vmatprep.subr.mxu0 0.0
    %451 = vmatpush1.xpose.msra.mxu0 0.0
    %452 = vmatprep.subr.mxu0 0.0
    %453 = vmatpush1.xpose.msra.mxu0 0.0
    %454 = vmatprep.subr.mxu0 0.0
    %455 = vmatpush1.xpose.msra.mxu0 0.0
    %456 = vmatprep.subr.mxu0 0.0
    %457 = vmatpush1.xpose.msra.mxu0 0.0
    %458 = vmatprep.subr.mxu0 0.0
    %459 = vmatpush1.xpose.msra.mxu0 0.0
    %460 = vmatprep.mubr.f32.mxu0 0.0
    %461 = vmatmul.mubr.f32.gmra.mrb[0].mxu0 %v388
    %v462 = vpop.f32.mrb[0].mxu0
    %v463 = vadd.f32 %v59, %v462
    %v464 = vpop.f32.mrb[0].mxu0
    %465 = vmatprep.mubr.f32.mxu0 0.0
    %466 = vmatmul.mubr.f32.gmra.mrb[0].mxu0 %v390
    %v467 = vpop.f32.mrb[0].mxu0
    %v468 = vadd.f32 %v60, %v467
    %v469 = vpop.f32.mrb[0].mxu0
    %470 = vdwg.mxu0
    %471 = vrot.lane.b32.xlu0 %v206, 96
    %v472 = vpop.permute.xlu0 %471
    %473 = vrot.lane.b32.xlu0 %v208, 96
    %v474 = vpop.permute.xlu0 %473
    %v475 = vsel %vm213, %v206, 0
    %v477 = vsel %vm213, %v208, 0
    %v479 = vsel %vm213, %v472, 0
    %v481 = vsel %vm213, %v474, 0
    %483 = vmatprep.subr.mxu0 0.0
    %484 = vmatpush1.xpose.msra.mxu0 %v479
    %485 = vmatprep.subr.mxu0 0.0
    %486 = vmatpush1.xpose.msra.mxu0 %v481
    %487 = vmatprep.subr.mxu0 0.0
    %488 = vmatpush1.xpose.msra.mxu0 0.0
    %489 = vmatprep.subr.mxu0 0.0
    %490 = vmatpush1.xpose.msra.mxu0 0.0
    %491 = vmatprep.subr.mxu0 0.0
    %492 = vmatpush1.xpose.msra.mxu0 0.0
    %493 = vmatprep.subr.mxu0 0.0
    %494 = vmatpush1.xpose.msra.mxu0 0.0
    %495 = vmatprep.subr.mxu0 0.0
    %496 = vmatpush1.xpose.msra.mxu0 0.0
    %497 = vmatprep.subr.mxu0 0.0
    %498 = vmatpush1.xpose.msra.mxu0 0.0
    %499 = vmatprep.subr.mxu0 0.0
    %500 = vmatpush1.xpose.msra.mxu0 0.0
    %501 = vmatprep.subr.mxu0 0.0
    %502 = vmatpush1.xpose.msra.mxu0 0.0
    %503 = vmatprep.subr.mxu0 0.0
    %504 = vmatpush1.xpose.msra.mxu0 0.0
    %505 = vmatprep.subr.mxu0 0.0
    %506 = vmatpush1.xpose.msra.mxu0 0.0
    %507 = vmatprep.subr.mxu0 0.0
    %508 = vmatpush1.xpose.msra.mxu0 0.0
    %509 = vmatprep.subr.mxu0 0.0
    %510 = vmatpush1.xpose.msra.mxu0 0.0
    %511 = vmatprep.subr.mxu0 0.0
    %512 = vmatpush1.xpose.msra.mxu0 0.0
    %513 = vmatprep.subr.mxu0 0.0
    %514 = vmatpush1.xpose.msra.mxu0 0.0
    %515 = vmatprep.subr.mxu0 0.0
    %516 = vmatpush1.xpose.msra.mxu0 0.0
    %517 = vmatprep.subr.mxu0 0.0
    %518 = vmatpush1.xpose.msra.mxu0 0.0
    %519 = vmatprep.subr.mxu0 0.0
    %520 = vmatpush1.xpose.msra.mxu0 0.0
    %521 = vmatprep.subr.mxu0 0.0
    %522 = vmatpush1.xpose.msra.mxu0 0.0
    %523 = vmatprep.subr.mxu0 0.0
    %524 = vmatpush1.xpose.msra.mxu0 0.0
    %525 = vmatprep.subr.mxu0 0.0
    %526 = vmatpush1.xpose.msra.mxu0 0.0
    %527 = vmatprep.subr.mxu0 0.0
    %528 = vmatpush1.xpose.msra.mxu0 0.0
    %529 = vmatprep.subr.mxu0 0.0
    %530 = vmatpush1.xpose.msra.mxu0 0.0
    %531 = vmatprep.subr.mxu0 0.0
    %532 = vmatpush1.xpose.msra.mxu0 0.0
    %533 = vmatprep.subr.mxu0 0.0
    %534 = vmatpush1.xpose.msra.mxu0 0.0
    %535 = vmatprep.subr.mxu0 0.0
    %536 = vmatpush1.xpose.msra.mxu0 0.0
    %537 = vmatprep.subr.mxu0 0.0
    %538 = vmatpush1.xpose.msra.mxu0 0.0
    %539 = vmatprep.subr.mxu0 0.0
    %540 = vmatpush1.xpose.msra.mxu0 0.0
    %541 = vmatprep.subr.mxu0 0.0
    %542 = vmatpush1.xpose.msra.mxu0 0.0
    %543 = vmatprep.subr.mxu0 0.0
    %544 = vmatpush1.xpose.msra.mxu0 0.0
    %545 = vmatprep.subr.mxu0 0.0
    %546 = vmatpush1.xpose.msra.mxu0 0.0
    %547 = vmatprep.mubr.f32.mxu0 0.0
    %548 = vmatmul.mubr.f32.gmra.mrb[0].mxu0 %v475
    %v549 = vpop.f32.mrb[0].mxu0
    %v550 = vadd.f32 %v59, %v549
    %v551 = vpop.f32.mrb[0].mxu0
    %552 = vmatprep.mubr.f32.mxu0 0.0
    %553 = vmatmul.mubr.f32.gmra.mrb[0].mxu0 %v477
    %v554 = vpop.f32.mrb[0].mxu0
    %v555 = vadd.f32 %v60, %v554
    %v556 = vpop.f32.mrb[0].mxu0
    %557 = vdwg.mxu0
    %vm558 = vcmask 130048
    %v559 = vsel %vm558, %v289, -inf
    %560 = vmax.xlane.f32.xlu0 %v559
    %v561 = vpop.xlane.xlu0 %560
    %v562 = vsel %vm558, %v294, -inf
    %563 = vmax.xlane.f32.xlu0 %v562
    %v564 = vpop.xlane.xlu0 %563
    %v565 = vsel %vm558, %v376, -inf
    %566 = vmax.xlane.f32.xlu0 %v565
    %v567 = vpop.xlane.xlu0 %566
    %v568 = vsel %vm558, %v381, -inf
    %569 = vmax.xlane.f32.xlu0 %v568
    %v570 = vpop.xlane.xlu0 %569
    %v571 = vsel %vm558, %v463, -inf
    %572 = vmax.xlane.f32.xlu0 %v571
    %v573 = vpop.xlane.xlu0 %572
    %v574 = vsel %vm558, %v468, -inf
    %575 = vmax.xlane.f32.xlu0 %v574
    %v576 = vpop.xlane.xlu0 %575
    %v577 = vsel %vm558, %v550, -inf
    %578 = vmax.xlane.f32.xlu0 %v577
    %v579 = vpop.xlane.xlu0 %578
    %v580 = vsel %vm558, %v555, -inf
    %581 = vmax.xlane.f32.xlu0 %v580
    %v582 = vpop.xlane.xlu0 %581
    %v583 = vsub.f32 %v289, %v561
    %v584 = vsub.f32 %v294, %v564
    %v585 = vsub.f32 %v376, %v567
    %v586 = vsub.f32 %v381, %v570
    %v587 = vsub.f32 %v463, %v573
    %v588 = vsub.f32 %v468, %v576
    %v589 = vsub.f32 %v550, %v579
    %v590 = vsub.f32 %v555, %v582
    %v591 = vmul.f32 %v583, 1.442695
    %v592 = vpow.pop %v591
    %v593 = vmul.f32 %v584, 1.442695
    %v594 = vpow.pop %v593
    %v595 = vmul.f32 %v585, 1.442695
    %v596 = vpow.pop %v595
    %v597 = vmul.f32 %v586, 1.442695
    %v598 = vpow.pop %v597
    %v599 = vmul.f32 %v587, 1.442695
    %v600 = vpow.pop %v599
    %v601 = vmul.f32 %v588, 1.442695
    %v602 = vpow.pop %v601
    %v603 = vmul.f32 %v589, 1.442695
    %v604 = vpow.pop %v603
    %v605 = vmul.f32 %v590, 1.442695
    %v606 = vpow.pop %v605
    %v607 = vsel %vm558, %v592, 0.0
    %608 = vadd.xlane.f32.xlu0 %v607
    %v609 = vpop.xlane.xlu0 %608
    %v610 = vsel %vm558, %v594, 0.0
    %611 = vadd.xlane.f32.xlu0 %v610
    %v612 = vpop.xlane.xlu0 %611
    %v613 = vsel %vm558, %v596, 0.0
    %614 = vadd.xlane.f32.xlu0 %v613
    %v615 = vpop.xlane.xlu0 %614
    %v616 = vsel %vm558, %v598, 0.0
    %617 = vadd.xlane.f32.xlu0 %v616
    %v618 = vpop.xlane.xlu0 %617
    %v619 = vsel %vm558, %v600, 0.0
    %620 = vadd.xlane.f32.xlu0 %v619
    %v621 = vpop.xlane.xlu0 %620
    %v622 = vsel %vm558, %v602, 0.0
    %623 = vadd.xlane.f32.xlu0 %v622
    %v624 = vpop.xlane.xlu0 %623
    %v625 = vsel %vm558, %v604, 0.0
    %626 = vadd.xlane.f32.xlu0 %v625
    %v627 = vpop.xlane.xlu0 %626
    %v628 = vsel %vm558, %v606, 0.0
    %629 = vadd.xlane.f32.xlu0 %v628
    %v630 = vpop.xlane.xlu0 %629
    %v631 = vrcp.pop %v609
    %v632 = vrcp.pop %v612
    %v633 = vrcp.pop %v615
    %v634 = vrcp.pop %v618
    %v635 = vrcp.pop %v621
    %v636 = vrcp.pop %v624
    %v637 = vrcp.pop %v627
    %v638 = vrcp.pop %v630
    %v639 = vmul.f32 %v592, %v631
    %v640 = vmul.f32 %v594, %v632
    %v641 = vmul.f32 %v596, %v633
    %v642 = vmul.f32 %v598, %v634
    %v643 = vmul.f32 %v600, %v635
    %v644 = vmul.f32 %v602, %v636
    %v645 = vmul.f32 %v604, %v637
    %v646 = vmul.f32 %v606, %v638
    %vm647 = vcmask 123904
    %v648 = vsel %vm647, %v639, 0.0
    %v649 = vsel %vm647, %v641, 0.0
    %v650 = vadd.f32 %v648, %v649
    %v651 = vsel %vm647, %v643, 0.0
    %v652 = vadd.f32 %v650, %v651
    %v653 = vsel %vm647, %v645, 0.0
    %v654 = vadd.f32 %v652, %v653
    %657 = vrot.lane.b32.xlu0 %v59, 112
    %v658 = vpop.permute.xlu0 %657
    %659 = vrot.lane.b32.xlu0 %v60, 112
    %v660 = vpop.permute.xlu0 %659
    %v664 = vsel %vm558, %v654, 0
    %666 = vmatprep.subr.mxu0 0.0
    %667 = vmatpush1.msra.mxu0 %v658
    %668 = vmatprep.subr.mxu0 0.0
    %669 = vmatpush1.msra.mxu0 %v660
    %670 = vmatprep.subr.mxu0 0.0
    %671 = vmatpush1.msra.mxu0 0.0
    %672 = vmatprep.subr.mxu0 0.0
    %673 = vmatpush1.msra.mxu0 0.0
    %674 = vmatprep.subr.mxu0 0.0
    %675 = vmatpush1.msra.mxu0 0.0
    %676 = vmatprep.subr.mxu0 0.0
    %677 = vmatpush1.msra.mxu0 0.0
    %678 = vmatprep.subr.mxu0 0.0
    %679 = vmatpush1.msra.mxu0 0.0
    %680 = vmatprep.subr.mxu0 0.0
    %681 = vmatpush1.msra.mxu0 0.0
    %682 = vmatprep.subr.mxu0 0.0
    %683 = vmatpush1.msra.mxu0 0.0
    %684 = vmatprep.subr.mxu0 0.0
    %685 = vmatpush1.msra.mxu0 0.0
    %686 = vmatprep.subr.mxu0 0.0
    %687 = vmatpush1.msra.mxu0 0.0
    %688 = vmatprep.subr.mxu0 0.0
    %689 = vmatpush1.msra.mxu0 0.0
    %690 = vmatprep.subr.mxu0 0.0
    %691 = vmatpush1.msra.mxu0 0.0
    %692 = vmatprep.subr.mxu0 0.0
    %693 = vmatpush1.msra.mxu0 0.0
    %694 = vmatprep.subr.mxu0 0.0
    %695 = vmatpush1.msra.mxu0 0.0
    %696 = vmatprep.subr.mxu0 0.0
    %697 = vmatpush1.msra.mxu0 0.0
    %698 = vmatprep.subr.mxu0 0.0
    %699 = vmatpush1.msra.mxu0 0.0
    %700 = vmatprep.subr.mxu0 0.0
    %701 = vmatpush1.msra.mxu0 0.0
    %702 = vmatprep.subr.mxu0 0.0
    %703 = vmatpush1.msra.mxu0 0.0
    %704 = vmatprep.subr.mxu0 0.0
    %705 = vmatpush1.msra.mxu0 0.0
    %706 = vmatprep.subr.mxu0 0.0
    %707 = vmatpush1.msra.mxu0 0.0
    %708 = vmatprep.subr.mxu0 0.0
    %709 = vmatpush1.msra.mxu0 0.0
    %710 = vmatprep.subr.mxu0 0.0
    %711 = vmatpush1.msra.mxu0 0.0
    %712 = vmatprep.subr.mxu0 0.0
    %713 = vmatpush1.msra.mxu0 0.0
    %714 = vmatprep.subr.mxu0 0.0
    %715 = vmatpush1.msra.mxu0 0.0
    %716 = vmatprep.subr.mxu0 0.0
    %717 = vmatpush1.msra.mxu0 0.0
    %718 = vmatprep.subr.mxu0 0.0
    %719 = vmatpush1.msra.mxu0 0.0
    %720 = vmatprep.subr.mxu0 0.0
    %721 = vmatpush1.msra.mxu0 0.0
    %722 = vmatprep.subr.mxu0 0.0
    %723 = vmatpush1.msra.mxu0 0.0
    %724 = vmatprep.subr.mxu0 0.0
    %725 = vmatpush1.msra.mxu0 0.0
    %726 = vmatprep.subr.mxu0 0.0
    %727 = vmatpush1.msra.mxu0 0.0
    %728 = vmatprep.subr.mxu0 0.0
    %729 = vmatpush1.msra.mxu0 0.0
    %730 = vmatprep.mubr.f32.mxu0 0.0
    %731 = vmatmul.mubr.f32.gmra.mrb[0].mxu0 %v664
    %v732 = vpop.f32.mrb[0].mxu0
    %v733 = vadd.f32 0.0, %v732
    %v734 = vpop.f32.mrb[0].mxu0
    %735 = vdwg.mxu0
    %vm736 = vcmask 58368
    %737 = vst.msk [vmem:[#allocation8] sm:$0x3] %vm736, %v733
    %738 = vrot.lane.b32.xlu0 %v187, 64
    %v739 = vpop.permute.xlu0 %738
    %740 = vrot.lane.b32.xlu0 %v192, 64
    %v741 = vpop.permute.xlu0 %740
    %v745 = vsel %vm558, %v639, 0
    %v748 = vsel %vm558, %v640, 0
    %750 = vmatprep.subr.mxu0 0.0
    %751 = vmatpush1.msra.mxu0 %v739
    %752 = vmatprep.subr.mxu0 0.0
    %753 = vmatpush1.msra.mxu0 %v741
    %754 = vmatprep.subr.mxu0 0.0
    %755 = vmatpush1.msra.mxu0 0.0
    %756 = vmatprep.subr.mxu0 0.0
    %757 = vmatpush1.msra.mxu0 0.0
    %758 = vmatprep.subr.mxu0 0.0
    %759 = vmatpush1.msra.mxu0 0.0
    %760 = vmatprep.subr.mxu0 0.0
    %761 = vmatpush1.msra.mxu0 0.0
    %762 = vmatprep.subr.mxu0 0.0
    %763 = vmatpush1.msra.mxu0 0.0
    %764 = vmatprep.subr.mxu0 0.0
    %765 = vmatpush1.msra.mxu0 0.0
    %766 = vmatprep.subr.mxu0 0.0
    %767 = vmatpush1.msra.mxu0 0.0
    %768 = vmatprep.subr.mxu0 0.0
    %769 = vmatpush1.msra.mxu0 0.0
    %770 = vmatprep.subr.mxu0 0.0
    %771 = vmatpush1.msra.mxu0 0.0
    %772 = vmatprep.subr.mxu0 0.0
    %773 = vmatpush1.msra.mxu0 0.0
    %774 = vmatprep.subr.mxu0 0.0
    %775 = vmatpush1.msra.mxu0 0.0
    %776 = vmatprep.subr.mxu0 0.0
    %777 = vmatpush1.msra.mxu0 0.0
    %778 = vmatprep.subr.mxu0 0.0
    %779 = vmatpush1.msra.mxu0 0.0
    %780 = vmatprep.subr.mxu0 0.0
    %781 = vmatpush1.msra.mxu0 0.0
    %782 = vmatprep.subr.mxu0 0.0
    %783 = vmatpush1.msra.mxu0 0.0
    %784 = vmatprep.subr.mxu0 0.0
    %785 = vmatpush1.msra.mxu0 0.0
    %786 = vmatprep.subr.mxu0 0.0
    %787 = vmatpush1.msra.mxu0 0.0
    %788 = vmatprep.subr.mxu0 0.0
    %789 = vmatpush1.msra.mxu0 0.0
    %790 = vmatprep.subr.mxu0 0.0
    %791 = vmatpush1.msra.mxu0 0.0
    %792 = vmatprep.subr.mxu0 0.0
    %793 = vmatpush1.msra.mxu0 0.0
    %794 = vmatprep.subr.mxu0 0.0
    %795 = vmatpush1.msra.mxu0 0.0
    %796 = vmatprep.subr.mxu0 0.0
    %797 = vmatpush1.msra.mxu0 0.0
    %798 = vmatprep.subr.mxu0 0.0
    %799 = vmatpush1.msra.mxu0 0.0
    %800 = vmatprep.subr.mxu0 0.0
    %801 = vmatpush1.msra.mxu0 0.0
    %802 = vmatprep.subr.mxu0 0.0
    %803 = vmatpush1.msra.mxu0 0.0
    %804 = vmatprep.subr.mxu0 0.0
    %805 = vmatpush1.msra.mxu0 0.0
    %806 = vmatprep.subr.mxu0 0.0
    %807 = vmatpush1.msra.mxu0 0.0
    %808 = vmatprep.subr.mxu0 0.0
    %809 = vmatpush1.msra.mxu0 0.0
    %810 = vmatprep.subr.mxu0 0.0
    %811 = vmatpush1.msra.mxu0 0.0
    %812 = vmatprep.subr.mxu0 0.0
    %813 = vmatpush1.msra.mxu0 0.0
    %814 = vmatprep.mubr.f32.mxu0 0.0
    %815 = vmatmul.mubr.f32.gmra.mrb[0].mxu0 %v745
    %v816 = vpop.f32.mrb[0].mxu0
    %v817 = vadd.f32 0.0, %v816
    %v818 = vpop.f32.mrb[0].mxu0
    %819 = vmatprep.mubr.f32.mxu0 0.0
    %820 = vmatmul.mubr.f32.gmra.mrb[0].mxu0 %v748
    %v821 = vpop.f32.mrb[0].mxu0
    %v822 = vadd.f32 0.0, %v821
    %v823 = vpop.f32.mrb[0].mxu0
    %824 = vdwg.mxu0
    %825 = vrot.lane.b32.xlu0 %v198, 64
    %v826 = vpop.permute.xlu0 %825
    %827 = vrot.lane.b32.xlu0 %v200, 64
    %v828 = vpop.permute.xlu0 %827
    %v832 = vsel %vm558, %v641, 0
    %v835 = vsel %vm558, %v642, 0
    %837 = vmatprep.subr.mxu0 0.0
    %838 = vmatpush1.msra.mxu0 %v826
    %839 = vmatprep.subr.mxu0 0.0
    %840 = vmatpush1.msra.mxu0 %v828
    %841 = vmatprep.subr.mxu0 0.0
    %842 = vmatpush1.msra.mxu0 0.0
    %843 = vmatprep.subr.mxu0 0.0
    %844 = vmatpush1.msra.mxu0 0.0
    %845 = vmatprep.subr.mxu0 0.0
    %846 = vmatpush1.msra.mxu0 0.0
    %847 = vmatprep.subr.mxu0 0.0
    %848 = vmatpush1.msra.mxu0 0.0
    %849 = vmatprep.subr.mxu0 0.0
    %850 = vmatpush1.msra.mxu0 0.0
    %851 = vmatprep.subr.mxu0 0.0
    %852 = vmatpush1.msra.mxu0 0.0
    %853 = vmatprep.subr.mxu0 0.0
    %854 = vmatpush1.msra.mxu0 0.0
    %855 = vmatprep.subr.mxu0 0.0
    %856 = vmatpush1.msra.mxu0 0.0
    %857 = vmatprep.subr.mxu0 0.0
    %858 = vmatpush1.msra.mxu0 0.0
    %859 = vmatprep.subr.mxu0 0.0
    %860 = vmatpush1.msra.mxu0 0.0
    %861 = vmatprep.subr.mxu0 0.0
    %862 = vmatpush1.msra.mxu0 0.0
    %863 = vmatprep.subr.mxu0 0.0
    %864 = vmatpush1.msra.mxu0 0.0
    %865 = vmatprep.subr.mxu0 0.0
    %866 = vmatpush1.msra.mxu0 0.0
    %867 = vmatprep.subr.mxu0 0.0
    %868 = vmatpush1.msra.mxu0 0.0
    %869 = vmatprep.subr.mxu0 0.0
    %870 = vmatpush1.msra.mxu0 0.0
    %871 = vmatprep.subr.mxu0 0.0
    %872 = vmatpush1.msra.mxu0 0.0
    %873 = vmatprep.subr.mxu0 0.0
    %874 = vmatpush1.msra.mxu0 0.0
    %875 = vmatprep.subr.mxu0 0.0
    %876 = vmatpush1.msra.mxu0 0.0
    %877 = vmatprep.subr.mxu0 0.0
    %878 = vmatpush1.msra.mxu0 0.0
    %879 = vmatprep.subr.mxu0 0.0
    %880 = vmatpush1.msra.mxu0 0.0
    %881 = vmatprep.subr.mxu0 0.0
    %882 = vmatpush1.msra.mxu0 0.0
    %883 = vmatprep.subr.mxu0 0.0
    %884 = vmatpush1.msra.mxu0 0.0
    %885 = vmatprep.subr.mxu0 0.0
    %886 = vmatpush1.msra.mxu0 0.0
    %887 = vmatprep.subr.mxu0 0.0
    %888 = vmatpush1.msra.mxu0 0.0
    %889 = vmatprep.subr.mxu0 0.0
    %890 = vmatpush1.msra.mxu0 0.0
    %891 = vmatprep.subr.mxu0 0.0
    %892 = vmatpush1.msra.mxu0 0.0
    %893 = vmatprep.subr.mxu0 0.0
    %894 = vmatpush1.msra.mxu0 0.0
    %895 = vmatprep.subr.mxu0 0.0
    %896 = vmatpush1.msra.mxu0 0.0
    %897 = vmatprep.subr.mxu0 0.0
    %898 = vmatpush1.msra.mxu0 0.0
    %899 = vmatprep.subr.mxu0 0.0
    %900 = vmatpush1.msra.mxu0 0.0
    %901 = vmatprep.mubr.f32.mxu0 0.0
    %902 = vmatmul.mubr.f32.gmra.mrb[0].mxu0 %v832
    %v903 = vpop.f32.mrb[0].mxu0
    %v904 = vadd.f32 0.0, %v903
    %v905 = vpop.f32.mrb[0].mxu0
    %906 = vmatprep.mubr.f32.mxu0 0.0
    %907 = vmatmul.mubr.f32.gmra.mrb[0].mxu0 %v835
    %v908 = vpop.f32.mrb[0].mxu0
    %v909 = vadd.f32 0.0, %v908
    %v910 = vpop.f32.mrb[0].mxu0
    %911 = vdwg.mxu0
    %912 = vrot.lane.b32.xlu0 %v202, 64
    %v913 = vpop.permute.xlu0 %912
    %914 = vrot.lane.b32.xlu0 %v204, 64
    %v915 = vpop.permute.xlu0 %914
    %v919 = vsel %vm558, %v643, 0
    %v922 = vsel %vm558, %v644, 0
    %924 = vmatprep.subr.mxu0 0.0
    %925 = vmatpush1.msra.mxu0 %v913
    %926 = vmatprep.subr.mxu0 0.0
    %927 = vmatpush1.msra.mxu0 %v915
    %928 = vmatprep.subr.mxu0 0.0
    %929 = vmatpush1.msra.mxu0 0.0
    %930 = vmatprep.subr.mxu0 0.0
    %931 = vmatpush1.msra.mxu0 0.0
    %932 = vmatprep.subr.mxu0 0.0
    %933 = vmatpush1.msra.mxu0 0.0
    %934 = vmatprep.subr.mxu0 0.0
    %935 = vmatpush1.msra.mxu0 0.0
    %936 = vmatprep.subr.mxu0 0.0
    %937 = vmatpush1.msra.mxu0 0.0
    %938 = vmatprep.subr.mxu0 0.0
    %939 = vmatpush1.msra.mxu0 0.0
    %940 = vmatprep.subr.mxu0 0.0
    %941 = vmatpush1.msra.mxu0 0.0
    %942 = vmatprep.subr.mxu0 0.0
    %943 = vmatpush1.msra.mxu0 0.0
    %944 = vmatprep.subr.mxu0 0.0
    %945 = vmatpush1.msra.mxu0 0.0
    %946 = vmatprep.subr.mxu0 0.0
    %947 = vmatpush1.msra.mxu0 0.0
    %948 = vmatprep.subr.mxu0 0.0
    %949 = vmatpush1.msra.mxu0 0.0
    %950 = vmatprep.subr.mxu0 0.0
    %951 = vmatpush1.msra.mxu0 0.0
    %952 = vmatprep.subr.mxu0 0.0
    %953 = vmatpush1.msra.mxu0 0.0
    %954 = vmatprep.subr.mxu0 0.0
    %955 = vmatpush1.msra.mxu0 0.0
    %956 = vmatprep.subr.mxu0 0.0
    %957 = vmatpush1.msra.mxu0 0.0
    %958 = vmatprep.subr.mxu0 0.0
    %959 = vmatpush1.msra.mxu0 0.0
    %960 = vmatprep.subr.mxu0 0.0
    %961 = vmatpush1.msra.mxu0 0.0
    %962 = vmatprep.subr.mxu0 0.0
    %963 = vmatpush1.msra.mxu0 0.0
    %964 = vmatprep.subr.mxu0 0.0
    %965 = vmatpush1.msra.mxu0 0.0
    %966 = vmatprep.subr.mxu0 0.0
    %967 = vmatpush1.msra.mxu0 0.0
    %968 = vmatprep.subr.mxu0 0.0
    %969 = vmatpush1.msra.mxu0 0.0
    %970 = vmatprep.subr.mxu0 0.0
    %971 = vmatpush1.msra.mxu0 0.0
    %972 = vmatprep.subr.mxu0 0.0
    %973 = vmatpush1.msra.mxu0 0.0
    %974 = vmatprep.subr.mxu0 0.0
    %975 = vmatpush1.msra.mxu0 0.0
    %976 = vmatprep.subr.mxu0 0.0
    %977 = vmatpush1.msra.mxu0 0.0
    %978 = vmatprep.subr.mxu0 0.0
    %979 = vmatpush1.msra.mxu0 0.0
    %980 = vmatprep.subr.mxu0 0.0
    %981 = vmatpush1.msra.mxu0 0.0
    %982 = vmatprep.subr.mxu0 0.0
    %983 = vmatpush1.msra.mxu0 0.0
    %984 = vmatprep.subr.mxu0 0.0
    %985 = vmatpush1.msra.mxu0 0.0
    %986 = vmatprep.subr.mxu0 0.0
    %987 = vmatpush1.msra.mxu0 0.0
    %988 = vmatprep.mubr.f32.mxu0 0.0
    %989 = vmatmul.mubr.f32.gmra.mrb[0].mxu0 %v919
    %v990 = vpop.f32.mrb[0].mxu0
    %v991 = vadd.f32 0.0, %v990
    %v992 = vpop.f32.mrb[0].mxu0
    %993 = vmatprep.mubr.f32.mxu0 0.0
    %994 = vmatmul.mubr.f32.gmra.mrb[0].mxu0 %v922
    %v995 = vpop.f32.mrb[0].mxu0
    %v996 = vadd.f32 0.0, %v995
    %v997 = vpop.f32.mrb[0].mxu0
    %998 = vdwg.mxu0
    %999 = vrot.lane.b32.xlu0 %v206, 64
    %v1000 = vpop.permute.xlu0 %999
    %1001 = vrot.lane.b32.xlu0 %v208, 64
    %v1002 = vpop.permute.xlu0 %1001
    %v1006 = vsel %vm558, %v645, 0
    %v1009 = vsel %vm558, %v646, 0
    %1011 = vmatprep.subr.mxu0 0.0
    %1012 = vmatpush1.msra.mxu0 %v1000
    %1013 = vmatprep.subr.mxu0 0.0
    %1014 = vmatpush1.msra.mxu0 %v1002
    %1015 = vmatprep.subr.mxu0 0.0
    %1016 = vmatpush1.msra.mxu0 0.0
    %1017 = vmatprep.subr.mxu0 0.0
    %1018 = vmatpush1.msra.mxu0 0.0
    %1019 = vmatprep.subr.mxu0 0.0
    %1020 = vmatpush1.msra.mxu0 0.0
    %1021 = vmatprep.subr.mxu0 0.0
    %1022 = vmatpush1.msra.mxu0 0.0
    %1023 = vmatprep.subr.mxu0 0.0
    %1024 = vmatpush1.msra.mxu0 0.0
    %1025 = vmatprep.subr.mxu0 0.0
    %1026 = vmatpush1.msra.mxu0 0.0
    %1027 = vmatprep.subr.mxu0 0.0
    %1028 = vmatpush1.msra.mxu0 0.0
    %1029 = vmatprep.subr.mxu0 0.0
    %1030 = vmatpush1.msra.mxu0 0.0
    %1031 = vmatprep.subr.mxu0 0.0
    %1032 = vmatpush1.msra.mxu0 0.0
    %1033 = vmatprep.subr.mxu0 0.0
    %1034 = vmatpush1.msra.mxu0 0.0
    %1035 = vmatprep.subr.mxu0 0.0
    %1036 = vmatpush1.msra.mxu0 0.0
    %1037 = vmatprep.subr.mxu0 0.0
    %1038 = vmatpush1.msra.mxu0 0.0
    %1039 = vmatprep.subr.mxu0 0.0
    %1040 = vmatpush1.msra.mxu0 0.0
    %1041 = vmatprep.subr.mxu0 0.0
    %1042 = vmatpush1.msra.mxu0 0.0
    %1043 = vmatprep.subr.mxu0 0.0
    %1044 = vmatpush1.msra.mxu0 0.0
    %1045 = vmatprep.subr.mxu0 0.0
    %1046 = vmatpush1.msra.mxu0 0.0
    %1047 = vmatprep.subr.mxu0 0.0
    %1048 = vmatpush1.msra.mxu0 0.0
    %1049 = vmatprep.subr.mxu0 0.0
    %1050 = vmatpush1.msra.mxu0 0.0
    %1051 = vmatprep.subr.mxu0 0.0
    %1052 = vmatpush1.msra.mxu0 0.0
    %1053 = vmatprep.subr.mxu0 0.0
    %1054 = vmatpush1.msra.mxu0 0.0
    %1055 = vmatprep.subr.mxu0 0.0
    %1056 = vmatpush1.msra.mxu0 0.0
    %1057 = vmatprep.subr.mxu0 0.0
    %1058 = vmatpush1.msra.mxu0 0.0
    %1059 = vmatprep.subr.mxu0 0.0
    %1060 = vmatpush1.msra.mxu0 0.0
    %1061 = vmatprep.subr.mxu0 0.0
    %1062 = vmatpush1.msra.mxu0 0.0
    %1063 = vmatprep.subr.mxu0 0.0
    %1064 = vmatpush1.msra.mxu0 0.0
    %1065 = vmatprep.subr.mxu0 0.0
    %1066 = vmatpush1.msra.mxu0 0.0
    %1067 = vmatprep.subr.mxu0 0.0
    %1068 = vmatpush1.msra.mxu0 0.0
    %1069 = vmatprep.subr.mxu0 0.0
    %1070 = vmatpush1.msra.mxu0 0.0
    %1071 = vmatprep.subr.mxu0 0.0
    %1072 = vmatpush1.msra.mxu0 0.0
    %1073 = vmatprep.subr.mxu0 0.0
    %1074 = vmatpush1.msra.mxu0 0.0
    %1075 = vmatprep.mubr.f32.mxu0 0.0
    %1076 = vmatmul.mubr.f32.gmra.mrb[0].mxu0 %v1006
    %v1077 = vpop.f32.mrb[0].mxu0
    %v1078 = vadd.f32 0.0, %v1077
    %v1079 = vpop.f32.mrb[0].mxu0
    %1080 = vmatprep.mubr.f32.mxu0 0.0
    %1081 = vmatmul.mubr.f32.gmra.mrb[0].mxu0 %v1009
    %v1082 = vpop.f32.mrb[0].mxu0
    %v1083 = vadd.f32 0.0, %v1082
    %v1084 = vpop.f32.mrb[0].mxu0
    %1085 = vdwg.mxu0
    %1088 = vrot.lane.b32.xlu0 %v904, 8
    %v1089 = vpop.permute.xlu0 %1088
    %1090 = vrot.lane.b32.xlu0 %v909, 8
    %v1091 = vpop.permute.xlu0 %1090
    %1096 = vrot.lane.b32.xlu0 %v991, 16
    %v1097 = vpop.permute.xlu0 %1096
    %1098 = vrot.lane.b32.xlu0 %v996, 16
    %v1099 = vpop.permute.xlu0 %1098
    %1104 = vrot.lane.b32.xlu0 %v1078, 24
    %v1105 = vpop.permute.xlu0 %1104
    %1106 = vrot.lane.b32.xlu0 %v1083, 24
    %v1107 = vpop.permute.xlu0 %1106
    %v1110 = vsel %vm213, %v817, %v1089
    %v1111 = vsel %vm213, %v822, %v1091
    %v1112 = vsel %vm558, %v1110, %v1097
    %v1113 = vsel %vm558, %v1111, %v1099
    %vm1114 = vcmask 195584
    %v1115 = vsel %vm1114, %v1112, %v1105
    %v1116 = vsel %vm1114, %v1113, %v1107
    %v1117 = vlaneseq
    %v1118 = vshrl.u32 %v1117, 7
    %v1119 = vsub.s32 0, %v1118
    %v1120 = vrot.slane %v62, %v1119
    %1125 = vrot.lane.b32.xlu0 %v51, 32
    %v1126 = vpop.permute.xlu0 %1125
    %1127 = vrot.lane.b32.xlu0 %v52, 32
    %v1128 = vpop.permute.xlu0 %1127
    %1129 = vrot.lane.b32.xlu0 %v53, 32
    %v1130 = vpop.permute.xlu0 %1129
    %1131 = vrot.lane.b32.xlu0 %v54, 32
    %v1132 = vpop.permute.xlu0 %1131
    %1138 = vrot.lane.b32.xlu0 %v1120, 96
    %v1139 = vpop.permute.xlu0 %1138
    %v1142 = vsel %vm115, %v1115, 0
    %v1145 = vsel %vm115, %v1116, 0
    %1147 = vmatprep.subr.mxu0 0.0
    %1148 = vmatpush1.msra.mxu0 %v1126
    %1149 = vmatprep.subr.mxu0 0.0
    %1150 = vmatpush1.msra.mxu0 %v1128
    %1151 = vmatprep.subr.mxu0 0.0
    %1152 = vmatpush1.msra.mxu0 %v1130
    %1153 = vmatprep.subr.mxu0 0.0
    %1154 = vmatpush1.msra.mxu0 %v1132
    %1155 = vmatprep.subr.mxu0 0.0
    %1156 = vmatpush1.msra.mxu0 0.0
    %1157 = vmatprep.subr.mxu0 0.0
    %1158 = vmatpush1.msra.mxu0 0.0
    %1159 = vmatprep.subr.mxu0 0.0
    %1160 = vmatpush1.msra.mxu0 0.0
    %1161 = vmatprep.subr.mxu0 0.0
    %1162 = vmatpush1.msra.mxu0 0.0
    %1163 = vmatprep.subr.mxu0 0.0
    %1164 = vmatpush1.msra.mxu0 0.0
    %1165 = vmatprep.subr.mxu0 0.0
    %1166 = vmatpush1.msra.mxu0 0.0
    %1167 = vmatprep.subr.mxu0 0.0
    %1168 = vmatpush1.msra.mxu0 0.0
    %1169 = vmatprep.subr.mxu0 0.0
    %1170 = vmatpush1.msra.mxu0 0.0
    %1171 = vmatprep.subr.mxu0 0.0
    %1172 = vmatpush1.msra.mxu0 0.0
    %1173 = vmatprep.subr.mxu0 0.0
    %1174 = vmatpush1.msra.mxu0 0.0
    %1175 = vmatprep.subr.mxu0 0.0
    %1176 = vmatpush1.msra.mxu0 0.0
    %1177 = vmatprep.subr.mxu0 0.0
    %1178 = vmatpush1.msra.mxu0 0.0
    %1179 = vmatprep.subr.mxu0 0.0
    %1180 = vmatpush1.msra.mxu0 0.0
    %1181 = vmatprep.subr.mxu0 0.0
    %1182 = vmatpush1.msra.mxu0 0.0
    %1183 = vmatprep.subr.mxu0 0.0
    %1184 = vmatpush1.msra.mxu0 0.0
    %1185 = vmatprep.subr.mxu0 0.0
    %1186 = vmatpush1.msra.mxu0 0.0
    %1187 = vmatprep.subr.mxu0 0.0
    %1188 = vmatpush1.msra.mxu0 0.0
    %1189 = vmatprep.subr.mxu0 0.0
    %1190 = vmatpush1.msra.mxu0 0.0
    %1191 = vmatprep.subr.mxu0 0.0
    %1192 = vmatpush1.msra.mxu0 0.0
    %1193 = vmatprep.subr.mxu0 0.0
    %1194 = vmatpush1.msra.mxu0 0.0
    %1195 = vmatprep.subr.mxu0 0.0
    %1196 = vmatpush1.msra.mxu0 0.0
    %1197 = vmatprep.subr.mxu0 0.0
    %1198 = vmatpush1.msra.mxu0 0.0
    %1199 = vmatprep.subr.mxu0 0.0
    %1200 = vmatpush1.msra.mxu0 0.0
    %1201 = vmatprep.subr.mxu0 0.0
    %1202 = vmatpush1.msra.mxu0 0.0
    %1203 = vmatprep.subr.mxu0 0.0
    %1204 = vmatpush1.msra.mxu0 0.0
    %1205 = vmatprep.subr.mxu0 0.0
    %1206 = vmatpush1.msra.mxu0 0.0
    %1207 = vmatprep.subr.mxu0 0.0
    %1208 = vmatpush1.msra.mxu0 0.0
    %1209 = vmatprep.subr.mxu0 0.0
    %1210 = vmatpush1.msra.mxu0 0.0
    %1211 = vmatprep.mubr.f32.mxu0 0.0
    %1212 = vmatmul.mubr.f32.gmra.mrb[0].mxu0 %v1142
    %v1213 = vpop.f32.mrb[0].mxu0
    %v1214 = vadd.f32 %v1139, %v1213
    %v1215 = vpop.f32.mrb[0].mxu0
    %1216 = vmatprep.mubr.f32.mxu0 0.0
    %1217 = vmatmul.mubr.f32.gmra.mrb[0].mxu0 %v1145
    %v1218 = vpop.f32.mrb[0].mxu0
    %v1219 = vadd.f32 %v1139, %v1218
    %v1220 = vpop.f32.mrb[0].mxu0
    %1221 = vdwg.mxu0
    %v1224 = vcombine.high %v1214, %v1214
    %v1226 = vunpack.c.l.s4 1983009808
    %v1227 = vunpack.c.0.s8 %v1226
    %v1228 = vlaneseq
    %v1229 = vshrl.u32 %v1228, 7
    %v1230 = vsub.s32 %v1227, %v1229
    %v1231 = vrot.slane %v1214, %v1230
    %v1233 = vunpack.c.l.s4 1983009808
    %v1234 = vunpack.c.0.s8 %v1233
    %v1235 = vlaneseq
    %v1236 = vshrl.u32 %v1235, 7
    %v1237 = vsub.s32 %v1234, %v1236
    %v1238 = vrot.slane %v1224, %v1237
    %v1239 = vcombine.high %v1231, %v1231
    %v1240 = vcombine.high %v1238, %v1238
    %v1241 = vcombine.high %v1219, %v1219
    %v1243 = vunpack.c.l.s4 1983009808
    %v1244 = vunpack.c.0.s8 %v1243
    %v1245 = vlaneseq
    %v1246 = vshrl.u32 %v1245, 7
    %v1247 = vsub.s32 %v1244, %v1246
    %v1248 = vrot.slane %v1219, %v1247
    %v1250 = vunpack.c.l.s4 1983009808
    %v1251 = vunpack.c.0.s8 %v1250
    %v1252 = vlaneseq
    %v1253 = vshrl.u32 %v1252, 7
    %v1254 = vsub.s32 %v1251, %v1253
    %v1255 = vrot.slane %v1241, %v1254
    %v1256 = vcombine.high %v1248, %v1248
    %v1257 = vcombine.high %v1255, %v1255
    %v1266 = vadd.f32 %v43, %v1231
    %v1267 = vadd.f32 %v44, %v1239
    %v1268 = vadd.f32 %v45, %v1238
    %v1269 = vadd.f32 %v46, %v1240
    %v1270 = vadd.f32 %v47, %v1248
    %v1271 = vadd.f32 %v48, %v1256
    %v1272 = vadd.f32 %v49, %v1255
    %v1273 = vadd.f32 %v50, %v1257
    %v1282 = vcombine.low %v1266, %v1267
    %v1283 = vcombine.low %v1268, %v1269
    %v1285 = vunpack.c.l.s4 1983009808
    %v1286 = vunpack.c.0.s8 %v1285
    %v1287 = vlaneseq
    %v1288 = vshrl.u32 %v1287, 7
    %v1289 = vsub.s32 %v1286, %v1288
    %v1290 = vrot.slane %v1282, %v1289
    %v1292 = vunpack.c.l.s4 1983009808
    %v1293 = vunpack.c.0.s8 %v1292
    %v1294 = vlaneseq
    %v1295 = vshrl.u32 %v1294, 7
    %v1296 = vsub.s32 %v1293, %v1295
    %v1297 = vrot.slane %v1283, %v1296
    %v1298 = vcombine.low %v1290, %v1297
    %v1299 = vcombine.low %v1270, %v1271
    %v1300 = vcombine.low %v1272, %v1273
    %v1302 = vunpack.c.l.s4 1983009808
    %v1303 = vunpack.c.0.s8 %v1302
    %v1304 = vlaneseq
    %v1305 = vshrl.u32 %v1304, 7
    %v1306 = vsub.s32 %v1303, %v1305
    %v1307 = vrot.slane %v1299, %v1306
    %v1309 = vunpack.c.l.s4 1983009808
    %v1310 = vunpack.c.0.s8 %v1309
    %v1311 = vlaneseq
    %v1312 = vshrl.u32 %v1311, 7
    %v1313 = vsub.s32 %v1310, %v1312
    %v1314 = vrot.slane %v1300, %v1313
    %v1315 = vcombine.low %v1307, %v1314
    %v1318 = vsel %vm115, %v1298, 0.0
    %1319 = vadd.xlane.f32.xlu0 %v1318
    %v1320 = vpop.xlane.xlu0 %1319
    %v1321 = vsel %vm115, %v1315, 0.0
    %1322 = vadd.xlane.f32.xlu0 %v1321
    %v1323 = vpop.xlane.xlu0 %1322
    %v1324 = vrcp.pop 32.0
    %v1325 = vmul.f32 %v1320, %v1324
    %v1326 = vmul.f32 %v1323, %v1324
    %v1330 = vunpack.c.l.s4 269488144
    %v1331 = vunpack.c.0.s8 %v1330
    %v1332 = vlaneseq
    %v1333 = vshrl.u32 %v1332, 7
    %v1334 = vsub.s32 %v1331, %v1333
    %v1335 = vrot.slane %v1325, %v1334
    %v1337 = vunpack.c.l.s4 842150450
    %v1338 = vunpack.c.0.s8 %v1337
    %v1339 = vlaneseq
    %v1340 = vshrl.u32 %v1339, 7
    %v1341 = vsub.s32 %v1338, %v1340
    %v1342 = vrot.slane %v1325, %v1341
    %v1344 = vunpack.c.l.s4 1414812756
    %v1345 = vunpack.c.0.s8 %v1344
    %v1346 = vlaneseq
    %v1347 = vshrl.u32 %v1346, 7
    %v1348 = vsub.s32 %v1345, %v1347
    %v1349 = vrot.slane %v1325, %v1348
    %v1351 = vunpack.c.l.s4 1987475062
    %v1352 = vunpack.c.0.s8 %v1351
    %v1353 = vlaneseq
    %v1354 = vshrl.u32 %v1353, 7
    %v1355 = vsub.s32 %v1352, %v1354
    %v1356 = vrot.slane %v1325, %v1355
    %v1358 = vunpack.c.l.s4 269488144
    %v1359 = vunpack.c.0.s8 %v1358
    %v1360 = vlaneseq
    %v1361 = vshrl.u32 %v1360, 7
    %v1362 = vsub.s32 %v1359, %v1361
    %v1363 = vrot.slane %v1326, %v1362
    %v1365 = vunpack.c.l.s4 842150450
    %v1366 = vunpack.c.0.s8 %v1365
    %v1367 = vlaneseq
    %v1368 = vshrl.u32 %v1367, 7
    %v1369 = vsub.s32 %v1366, %v1368
    %v1370 = vrot.slane %v1326, %v1369
    %v1372 = vunpack.c.l.s4 1414812756
    %v1373 = vunpack.c.0.s8 %v1372
    %v1374 = vlaneseq
    %v1375 = vshrl.u32 %v1374, 7
    %v1376 = vsub.s32 %v1373, %v1375
    %v1377 = vrot.slane %v1326, %v1376
    %v1379 = vunpack.c.l.s4 1987475062
    %v1380 = vunpack.c.0.s8 %v1379
    %v1381 = vlaneseq
    %v1382 = vshrl.u32 %v1381, 7
    %v1383 = vsub.s32 %v1380, %v1382
    %v1384 = vrot.slane %v1326, %v1383
    %v1393 = vsub.f32 %v1266, %v1335
    %v1394 = vsub.f32 %v1267, %v1342
    %v1395 = vsub.f32 %v1268, %v1349
    %v1396 = vsub.f32 %v1269, %v1356
    %v1397 = vsub.f32 %v1270, %v1363
    %v1398 = vsub.f32 %v1271, %v1370
    %v1399 = vsub.f32 %v1272, %v1377
    %v1400 = vsub.f32 %v1273, %v1384
    %v1401 = vmul.f32 %v1393, %v1393
    %v1402 = vmul.f32 %v1394, %v1394
    %v1403 = vmul.f32 %v1395, %v1395
    %v1404 = vmul.f32 %v1396, %v1396
    %v1405 = vmul.f32 %v1397, %v1397
    %v1406 = vmul.f32 %v1398, %v1398
    %v1407 = vmul.f32 %v1399, %v1399
    %v1408 = vmul.f32 %v1400, %v1400
    %v1417 = vcombine.low %v1401, %v1402
    %v1418 = vcombine.low %v1403, %v1404
    %v1420 = vunpack.c.l.s4 1983009808
    %v1421 = vunpack.c.0.s8 %v1420
    %v1422 = vlaneseq
    %v1423 = vshrl.u32 %v1422, 7
    %v1424 = vsub.s32 %v1421, %v1423
    %v1425 = vrot.slane %v1417, %v1424
    %v1427 = vunpack.c.l.s4 1983009808
    %v1428 = vunpack.c.0.s8 %v1427
    %v1429 = vlaneseq
    %v1430 = vshrl.u32 %v1429, 7
    %v1431 = vsub.s32 %v1428, %v1430
    %v1432 = vrot.slane %v1418, %v1431
    %v1433 = vcombine.low %v1425, %v1432
    %v1434 = vcombine.low %v1405, %v1406
    %v1435 = vcombine.low %v1407, %v1408
    %v1437 = vunpack.c.l.s4 1983009808
    %v1438 = vunpack.c.0.s8 %v1437
    %v1439 = vlaneseq
    %v1440 = vshrl.u32 %v1439, 7
    %v1441 = vsub.s32 %v1438, %v1440
    %v1442 = vrot.slane %v1434, %v1441
    %v1444 = vunpack.c.l.s4 1983009808
    %v1445 = vunpack.c.0.s8 %v1444
    %v1446 = vlaneseq
    %v1447 = vshrl.u32 %v1446, 7
    %v1448 = vsub.s32 %v1445, %v1447
    %v1449 = vrot.slane %v1435, %v1448
    %v1450 = vcombine.low %v1442, %v1449
    %v1453 = vsel %vm115, %v1433, 0.0
    %1454 = vadd.xlane.f32.xlu0 %v1453
    %v1455 = vpop.xlane.xlu0 %1454
    %v1456 = vsel %vm115, %v1450, 0.0
    %1457 = vadd.xlane.f32.xlu0 %v1456
    %v1458 = vpop.xlane.xlu0 %1457
    %v1459 = vmul.f32 %v1455, %v1324
    %v1460 = vmul.f32 %v1458, %v1324
    %v1461 = vadd.f32 %v1459, 1e-05
    %v1462 = vadd.f32 %v1460, 1e-05
    %v1463 = vrsqrt.pop %v1461
    %v1464 = vrsqrt.pop %v1462
    %v1468 = vunpack.c.l.s4 269488144
    %v1469 = vunpack.c.0.s8 %v1468
    %v1470 = vlaneseq
    %v1471 = vshrl.u32 %v1470, 7
    %v1472 = vsub.s32 %v1469, %v1471
    %v1473 = vrot.slane %v1463, %v1472
    %v1475 = vunpack.c.l.s4 842150450
    %v1476 = vunpack.c.0.s8 %v1475
    %v1477 = vlaneseq
    %v1478 = vshrl.u32 %v1477, 7
    %v1479 = vsub.s32 %v1476, %v1478
    %v1480 = vrot.slane %v1463, %v1479
    %v1482 = vunpack.c.l.s4 1414812756
    %v1483 = vunpack.c.0.s8 %v1482
    %v1484 = vlaneseq
    %v1485 = vshrl.u32 %v1484, 7
    %v1486 = vsub.s32 %v1483, %v1485
    %v1487 = vrot.slane %v1463, %v1486
    %v1489 = vunpack.c.l.s4 1987475062
    %v1490 = vunpack.c.0.s8 %v1489
    %v1491 = vlaneseq
    %v1492 = vshrl.u32 %v1491, 7
    %v1493 = vsub.s32 %v1490, %v1492
    %v1494 = vrot.slane %v1463, %v1493
    %v1496 = vunpack.c.l.s4 269488144
    %v1497 = vunpack.c.0.s8 %v1496
    %v1498 = vlaneseq
    %v1499 = vshrl.u32 %v1498, 7
    %v1500 = vsub.s32 %v1497, %v1499
    %v1501 = vrot.slane %v1464, %v1500
    %v1503 = vunpack.c.l.s4 842150450
    %v1504 = vunpack.c.0.s8 %v1503
    %v1505 = vlaneseq
    %v1506 = vshrl.u32 %v1505, 7
    %v1507 = vsub.s32 %v1504, %v1506
    %v1508 = vrot.slane %v1464, %v1507
    %v1510 = vunpack.c.l.s4 1414812756
    %v1511 = vunpack.c.0.s8 %v1510
    %v1512 = vlaneseq
    %v1513 = vshrl.u32 %v1512, 7
    %v1514 = vsub.s32 %v1511, %v1513
    %v1515 = vrot.slane %v1464, %v1514
    %v1517 = vunpack.c.l.s4 1987475062
    %v1518 = vunpack.c.0.s8 %v1517
    %v1519 = vlaneseq
    %v1520 = vshrl.u32 %v1519, 7
    %v1521 = vsub.s32 %v1518, %v1520
    %v1522 = vrot.slane %v1464, %v1521
    %v1531 = vmul.f32 %v1393, %v1473
    %v1532 = vmul.f32 %v1394, %v1480
    %v1533 = vmul.f32 %v1395, %v1487
    %v1534 = vmul.f32 %v1396, %v1494
    %v1535 = vmul.f32 %v1397, %v1501
    %v1536 = vmul.f32 %v1398, %v1508
    %v1537 = vmul.f32 %v1399, %v1515
    %v1538 = vmul.f32 %v1400, %v1522
    %v1539 = vlaneseq
    %v1540 = vshrl.u32 %v1539, 7
    %v1541 = vsub.s32 0, %v1540
    %v1542 = vrot.slane %v63, %v1541
    %v1544 = vcombine.high %v1542, %v1542
    %v1546 = vunpack.c.l.s4 1983009808
    %v1547 = vunpack.c.0.s8 %v1546
    %v1548 = vlaneseq
    %v1549 = vshrl.u32 %v1548, 7
    %v1550 = vsub.s32 %v1547, %v1549
    %v1551 = vrot.slane %v1542, %v1550
    %v1553 = vunpack.c.l.s4 1983009808
    %v1554 = vunpack.c.0.s8 %v1553
    %v1555 = vlaneseq
    %v1556 = vshrl.u32 %v1555, 7
    %v1557 = vsub.s32 %v1554, %v1556
    %v1558 = vrot.slane %v1544, %v1557
    %v1559 = vcombine.high %v1551, %v1551
    %v1560 = vcombine.high %v1558, %v1558
    %1561 = vrot.lane.b32.xlu0 %v1551, 64
    %v1562 = vpop.permute.xlu0 %1561
    %1563 = vrot.lane.b32.xlu0 %v1559, 64
    %v1564 = vpop.permute.xlu0 %1563
    %1565 = vrot.lane.b32.xlu0 %v1558, 64
    %v1566 = vpop.permute.xlu0 %1565
    %1567 = vrot.lane.b32.xlu0 %v1560, 64
    %v1568 = vpop.permute.xlu0 %1567
    %v1573 = vmul.f32 %v1531, %v1562
    %v1574 = vmul.f32 %v1532, %v1564
    %v1575 = vmul.f32 %v1533, %v1566
    %v1576 = vmul.f32 %v1534, %v1568
    %v1577 = vmul.f32 %v1535, %v1562
    %v1578 = vmul.f32 %v1536, %v1564
    %v1579 = vmul.f32 %v1537, %v1566
    %v1580 = vmul.f32 %v1538, %v1568
    %1581 = vrot.lane.b32.xlu0 %v1551, 32
    %v1582 = vpop.permute.xlu0 %1581
    %1583 = vrot.lane.b32.xlu0 %v1559, 32
    %v1584 = vpop.permute.xlu0 %1583
    %1585 = vrot.lane.b32.xlu0 %v1558, 32
    %v1586 = vpop.permute.xlu0 %1585
    %1587 = vrot.lane.b32.xlu0 %v1560, 32
    %v1588 = vpop.permute.xlu0 %1587
    %v1593 = vadd.f32 %v1573, %v1582
    %v1594 = vadd.f32 %v1574, %v1584
    %v1595 = vadd.f32 %v1575, %v1586
    %v1596 = vadd.f32 %v1576, %v1588
    %v1597 = vadd.f32 %v1577, %v1582
    %v1598 = vadd.f32 %v1578, %v1584
    %v1599 = vadd.f32 %v1579, %v1586
    %v1600 = vadd.f32 %v1580, %v1588
    %v1609 = vcombine.low %v1593, %v1594
    %v1610 = vcombine.low %v1595, %v1596
    %v1612 = vunpack.c.l.s4 1983009808
    %v1613 = vunpack.c.0.s8 %v1612
    %v1614 = vlaneseq
    %v1615 = vshrl.u32 %v1614, 7
    %v1616 = vsub.s32 %v1613, %v1615
    %v1617 = vrot.slane %v1609, %v1616
    %v1619 = vunpack.c.l.s4 1983009808
    %v1620 = vunpack.c.0.s8 %v1619
    %v1621 = vlaneseq
    %v1622 = vshrl.u32 %v1621, 7
    %v1623 = vsub.s32 %v1620, %v1622
    %v1624 = vrot.slane %v1610, %v1623
    %v1625 = vcombine.low %v1617, %v1624
    %v1626 = vcombine.low %v1597, %v1598
    %v1627 = vcombine.low %v1599, %v1600
    %v1629 = vunpack.c.l.s4 1983009808
    %v1630 = vunpack.c.0.s8 %v1629
    %v1631 = vlaneseq
    %v1632 = vshrl.u32 %v1631, 7
    %v1633 = vsub.s32 %v1630, %v1632
    %v1634 = vrot.slane %v1626, %v1633
    %v1636 = vunpack.c.l.s4 1983009808
    %v1637 = vunpack.c.0.s8 %v1636
    %v1638 = vlaneseq
    %v1639 = vshrl.u32 %v1638, 7
    %v1640 = vsub.s32 %v1637, %v1639
    %v1641 = vrot.slane %v1627, %v1640
    %v1642 = vcombine.low %v1634, %v1641
    %1643 = vrot.lane.b32.xlu0 %v1120, 64
    %v1644 = vpop.permute.xlu0 %1643
    %v1646 = vsel %vm115, %v1625, 0
    %v1648 = vsel %vm115, %v1642, 0
    %1650 = vmatprep.subr.mxu0 0.0
    %1651 = vmatpush1.msra.mxu0 %v55
    %1652 = vmatprep.subr.mxu0 0.0
    %1653 = vmatpush1.msra.mxu0 %v56
    %1654 = vmatprep.subr.mxu0 0.0
    %1655 = vmatpush1.msra.mxu0 %v57
    %1656 = vmatprep.subr.mxu0 0.0
    %1657 = vmatpush1.msra.mxu0 %v58
    %1658 = vmatprep.subr.mxu0 0.0
    %1659 = vmatpush1.msra.mxu0 0.0
    %1660 = vmatprep.subr.mxu0 0.0
    %1661 = vmatpush1.msra.mxu0 0.0
    %1662 = vmatprep.subr.mxu0 0.0
    %1663 = vmatpush1.msra.mxu0 0.0
    %1664 = vmatprep.subr.mxu0 0.0
    %1665 = vmatpush1.msra.mxu0 0.0
    %1666 = vmatprep.subr.mxu0 0.0
    %1667 = vmatpush1.msra.mxu0 0.0
    %1668 = vmatprep.subr.mxu0 0.0
    %1669 = vmatpush1.msra.mxu0 0.0
    %1670 = vmatprep.subr.mxu0 0.0
    %1671 = vmatpush1.msra.mxu0 0.0
    %1672 = vmatprep.subr.mxu0 0.0
    %1673 = vmatpush1.msra.mxu0 0.0
    %1674 = vmatprep.subr.mxu0 0.0
    %1675 = vmatpush1.msra.mxu0 0.0
    %1676 = vmatprep.subr.mxu0 0.0
    %1677 = vmatpush1.msra.mxu0 0.0
    %1678 = vmatprep.subr.mxu0 0.0
    %1679 = vmatpush1.msra.mxu0 0.0
    %1680 = vmatprep.subr.mxu0 0.0
    %1681 = vmatpush1.msra.mxu0 0.0
    %1682 = vmatprep.subr.mxu0 0.0
    %1683 = vmatpush1.msra.mxu0 0.0
    %1684 = vmatprep.subr.mxu0 0.0
    %1685 = vmatpush1.msra.mxu0 0.0
    %1686 = vmatprep.subr.mxu0 0.0
    %1687 = vmatpush1.msra.mxu0 0.0
    %1688 = vmatprep.subr.mxu0 0.0
    %1689 = vmatpush1.msra.mxu0 0.0
    %1690 = vmatprep.subr.mxu0 0.0
    %1691 = vmatpush1.msra.mxu0 0.0
    %1692 = vmatprep.subr.mxu0 0.0
    %1693 = vmatpush1.msra.mxu0 0.0
    %1694 = vmatprep.subr.mxu0 0.0
    %1695 = vmatpush1.msra.mxu0 0.0
    %1696 = vmatprep.subr.mxu0 0.0
    %1697 = vmatpush1.msra.mxu0 0.0
    %1698 = vmatprep.subr.mxu0 0.0
    %1699 = vmatpush1.msra.mxu0 0.0
    %1700 = vmatprep.subr.mxu0 0.0
    %1701 = vmatpush1.msra.mxu0 0.0
    %1702 = vmatprep.subr.mxu0 0.0
    %1703 = vmatpush1.msra.mxu0 0.0
    %1704 = vmatprep.subr.mxu0 0.0
    %1705 = vmatpush1.msra.mxu0 0.0
    %1706 = vmatprep.subr.mxu0 0.0
    %1707 = vmatpush1.msra.mxu0 0.0
    %1708 = vmatprep.subr.mxu0 0.0
    %1709 = vmatpush1.msra.mxu0 0.0
    %1710 = vmatprep.subr.mxu0 0.0
    %1711 = vmatpush1.msra.mxu0 0.0
    %1712 = vmatprep.subr.mxu0 0.0
    %1713 = vmatpush1.msra.mxu0 0.0
    %1714 = vmatprep.mubr.f32.mxu0 0.0
    %1715 = vmatmul.mubr.f32.gmra.mrb[0].mxu0 %v1646
    %v1716 = vpop.f32.mrb[0].mxu0
    %v1717 = vadd.f32 %v1644, %v1716
    %v1718 = vpop.f32.mrb[0].mxu0
    %1719 = vmatprep.mubr.f32.mxu0 0.0
    %1720 = vmatmul.mubr.f32.gmra.mrb[0].mxu0 %v1648
    %v1721 = vpop.f32.mrb[0].mxu0
    %v1722 = vadd.f32 %v1644, %v1721
    %v1723 = vpop.f32.mrb[0].mxu0
    %1724 = vdwg.mxu0
    %v1725 = vmax.f32 %v1717, 0.0
    %v1726 = vmax.f32 %v1722, 0.0
    %1731 = vrot.lane.b32.xlu0 %v55, 64
    %v1732 = vpop.permute.xlu0 %1731
    %1733 = vrot.lane.b32.xlu0 %v56, 64
    %v1734 = vpop.permute.xlu0 %1733
    %1735 = vrot.lane.b32.xlu0 %v57, 64
    %v1736 = vpop.permute.xlu0 %1735
    %1737 = vrot.lane.b32.xlu0 %v58, 64
    %v1738 = vpop.permute.xlu0 %1737
    %1739 = vrot.lane.b32.xlu0 %v1542, 96
    %v1740 = vpop.permute.xlu0 %1739
    %vm1742 = vcmask 523264
    %v1744 = vsel %vm1742, %v1725, 0
    %v1747 = vsel %vm1742, %v1726, 0
    %v1749 = vsel %vm1742, %v1732, 0
    %v1751 = vsel %vm1742, %v1734, 0
    %v1753 = vsel %vm1742, %v1736, 0
    %v1755 = vsel %vm1742, %v1738, 0
    %1757 = vmatprep.subr.mxu0 0.0
    %1758 = vmatpush1.xpose.msra.mxu0 %v1749
    %1759 = vmatprep.subr.mxu0 0.0
    %1760 = vmatpush1.xpose.msra.mxu0 %v1751
    %1761 = vmatprep.subr.mxu0 0.0
    %1762 = vmatpush1.xpose.msra.mxu0 %v1753
    %1763 = vmatprep.subr.mxu0 0.0
    %1764 = vmatpush1.xpose.msra.mxu0 %v1755
    %1765 = vmatprep.subr.mxu0 0.0
    %1766 = vmatpush1.xpose.msra.mxu0 0.0
    %1767 = vmatprep.subr.mxu0 0.0
    %1768 = vmatpush1.xpose.msra.mxu0 0.0
    %1769 = vmatprep.subr.mxu0 0.0
    %1770 = vmatpush1.xpose.msra.mxu0 0.0
    %1771 = vmatprep.subr.mxu0 0.0
    %1772 = vmatpush1.xpose.msra.mxu0 0.0
    %1773 = vmatprep.subr.mxu0 0.0
    %1774 = vmatpush1.xpose.msra.mxu0 0.0
    %1775 = vmatprep.subr.mxu0 0.0
    %1776 = vmatpush1.xpose.msra.mxu0 0.0
    %1777 = vmatprep.subr.mxu0 0.0
    %1778 = vmatpush1.xpose.msra.mxu0 0.0
    %1779 = vmatprep.subr.mxu0 0.0
    %1780 = vmatpush1.xpose.msra.mxu0 0.0
    %1781 = vmatprep.subr.mxu0 0.0
    %1782 = vmatpush1.xpose.msra.mxu0 0.0
    %1783 = vmatprep.subr.mxu0 0.0
    %1784 = vmatpush1.xpose.msra.mxu0 0.0
    %1785 = vmatprep.subr.mxu0 0.0
    %1786 = vmatpush1.xpose.msra.mxu0 0.0
    %1787 = vmatprep.subr.mxu0 0.0
    %1788 = vmatpush1.xpose.msra.mxu0 0.0
    %1789 = vmatprep.subr.mxu0 0.0
    %1790 = vmatpush1.xpose.msra.mxu0 0.0
    %1791 = vmatprep.subr.mxu0 0.0
    %1792 = vmatpush1.xpose.msra.mxu0 0.0
    %1793 = vmatprep.subr.mxu0 0.0
    %1794 = vmatpush1.xpose.msra.mxu0 0.0
    %1795 = vmatprep.subr.mxu0 0.0
    %1796 = vmatpush1.xpose.msra.mxu0 0.0
    %1797 = vmatprep.subr.mxu0 0.0
    %1798 = vmatpush1.xpose.msra.mxu0 0.0
    %1799 = vmatprep.subr.mxu0 0.0
    %1800 = vmatpush1.xpose.msra.mxu0 0.0
    %1801 = vmatprep.subr.mxu0 0.0
    %1802 = vmatpush1.xpose.msra.mxu0 0.0
    %1803 = vmatprep.subr.mxu0 0.0
    %1804 = vmatpush1.xpose.msra.mxu0 0.0
    %1805 = vmatprep.subr.mxu0 0.0
    %1806 = vmatpush1.xpose.msra.mxu0 0.0
    %1807 = vmatprep.subr.mxu0 0.0
    %1808 = vmatpush1.xpose.msra.mxu0 0.0
    %1809 = vmatprep.subr.mxu0 0.0
    %1810 = vmatpush1.xpose.msra.mxu0 0.0
    %1811 = vmatprep.subr.mxu0 0.0
    %1812 = vmatpush1.xpose.msra.mxu0 0.0
    %1813 = vmatprep.subr.mxu0 0.0
    %1814 = vmatpush1.xpose.msra.mxu0 0.0
    %1815 = vmatprep.subr.mxu0 0.0
    %1816 = vmatpush1.xpose.msra.mxu0 0.0
    %1817 = vmatprep.subr.mxu0 0.0
    %1818 = vmatpush1.xpose.msra.mxu0 0.0
    %1819 = vmatprep.subr.mxu0 0.0
    %1820 = vmatpush1.xpose.msra.mxu0 0.0
    %1821 = vmatprep.mubr.f32.mxu0 0.0
    %1822 = vmatmul.mubr.f32.gmra.mrb[0].mxu0 %v1744
    %v1823 = vpop.f32.mrb[0].mxu0
    %v1824 = vadd.f32 %v1740, %v1823
    %v1825 = vpop.f32.mrb[0].mxu0
    %1826 = vmatprep.mubr.f32.mxu0 0.0
    %1827 = vmatmul.mubr.f32.gmra.mrb[0].mxu0 %v1747
    %v1828 = vpop.f32.mrb[0].mxu0
    %v1829 = vadd.f32 %v1740, %v1828
    %v1830 = vpop.f32.mrb[0].mxu0
    %1831 = vdwg.mxu0
    %v1834 = vcombine.high %v1824, %v1824
    %v1836 = vunpack.c.l.s4 1983009808
    %v1837 = vunpack.c.0.s8 %v1836
    %v1838 = vlaneseq
    %v1839 = vshrl.u32 %v1838, 7
    %v1840 = vsub.s32 %v1837, %v1839
    %v1841 = vrot.slane %v1824, %v1840
    %v1843 = vunpack.c.l.s4 1983009808
    %v1844 = vunpack.c.0.s8 %v1843
    %v1845 = vlaneseq
    %v1846 = vshrl.u32 %v1845, 7
    %v1847 = vsub.s32 %v1844, %v1846
    %v1848 = vrot.slane %v1834, %v1847
    %v1849 = vcombine.high %v1841, %v1841
    %v1850 = vcombine.high %v1848, %v1848
    %v1851 = vcombine.high %v1829, %v1829
    %v1853 = vunpack.c.l.s4 1983009808
    %v1854 = vunpack.c.0.s8 %v1853
    %v1855 = vlaneseq
    %v1856 = vshrl.u32 %v1855, 7
    %v1857 = vsub.s32 %v1854, %v1856
    %v1858 = vrot.slane %v1829, %v1857
    %v1860 = vunpack.c.l.s4 1983009808
    %v1861 = vunpack.c.0.s8 %v1860
    %v1862 = vlaneseq
    %v1863 = vshrl.u32 %v1862, 7
    %v1864 = vsub.s32 %v1861, %v1863
    %v1865 = vrot.slane %v1851, %v1864
    %v1866 = vcombine.high %v1858, %v1858
    %v1867 = vcombine.high %v1865, %v1865
    %v1876 = vadd.f32 %v1593, %v1841
    %v1877 = vadd.f32 %v1594, %v1849
    %v1878 = vadd.f32 %v1595, %v1848
    %v1879 = vadd.f32 %v1596, %v1850
    %v1880 = vadd.f32 %v1597, %v1858
    %v1881 = vadd.f32 %v1598, %v1866
    %v1882 = vadd.f32 %v1599, %v1865
    %v1883 = vadd.f32 %v1600, %v1867
    %v1892 = vcombine.low %v1876, %v1877
    %v1893 = vcombine.low %v1878, %v1879
    %v1895 = vunpack.c.l.s4 1983009808
    %v1896 = vunpack.c.0.s8 %v1895
    %v1897 = vlaneseq
    %v1898 = vshrl.u32 %v1897, 7
    %v1899 = vsub.s32 %v1896, %v1898
    %v1900 = vrot.slane %v1892, %v1899
    %v1902 = vunpack.c.l.s4 1983009808
    %v1903 = vunpack.c.0.s8 %v1902
    %v1904 = vlaneseq
    %v1905 = vshrl.u32 %v1904, 7
    %v1906 = vsub.s32 %v1903, %v1905
    %v1907 = vrot.slane %v1893, %v1906
    %v1908 = vcombine.low %v1900, %v1907
    %v1909 = vcombine.low %v1880, %v1881
    %v1910 = vcombine.low %v1882, %v1883
    %v1912 = vunpack.c.l.s4 1983009808
    %v1913 = vunpack.c.0.s8 %v1912
    %v1914 = vlaneseq
    %v1915 = vshrl.u32 %v1914, 7
    %v1916 = vsub.s32 %v1913, %v1915
    %v1917 = vrot.slane %v1909, %v1916
    %v1919 = vunpack.c.l.s4 1983009808
    %v1920 = vunpack.c.0.s8 %v1919
    %v1921 = vlaneseq
    %v1922 = vshrl.u32 %v1921, 7
    %v1923 = vsub.s32 %v1920, %v1922
    %v1924 = vrot.slane %v1910, %v1923
    %v1925 = vcombine.low %v1917, %v1924
    %v1928 = vsel %vm115, %v1908, 0.0
    %1929 = vadd.xlane.f32.xlu0 %v1928
    %v1930 = vpop.xlane.xlu0 %1929
    %v1931 = vsel %vm115, %v1925, 0.0
    %1932 = vadd.xlane.f32.xlu0 %v1931
    %v1933 = vpop.xlane.xlu0 %1932
    %v1934 = vmul.f32 %v1930, %v1324
    %v1935 = vmul.f32 %v1933, %v1324
    %v1939 = vunpack.c.l.s4 269488144
    %v1940 = vunpack.c.0.s8 %v1939
    %v1941 = vlaneseq
    %v1942 = vshrl.u32 %v1941, 7
    %v1943 = vsub.s32 %v1940, %v1942
    %v1944 = vrot.slane %v1934, %v1943
    %v1946 = vunpack.c.l.s4 842150450
    %v1947 = vunpack.c.0.s8 %v1946
    %v1948 = vlaneseq
    %v1949 = vshrl.u32 %v1948, 7
    %v1950 = vsub.s32 %v1947, %v1949
    %v1951 = vrot.slane %v1934, %v1950
    %v1953 = vunpack.c.l.s4 1414812756
    %v1954 = vunpack.c.0.s8 %v1953
    %v1955 = vlaneseq
    %v1956 = vshrl.u32 %v1955, 7
    %v1957 = vsub.s32 %v1954, %v1956
    %v1958 = vrot.slane %v1934, %v1957
    %v1960 = vunpack.c.l.s4 1987475062
    %v1961 = vunpack.c.0.s8 %v1960
    %v1962 = vlaneseq
    %v1963 = vshrl.u32 %v1962, 7
    %v1964 = vsub.s32 %v1961, %v1963
    %v1965 = vrot.slane %v1934, %v1964
    %v1967 = vunpack.c.l.s4 269488144
    %v1968 = vunpack.c.0.s8 %v1967
    %v1969 = vlaneseq
    %v1970 = vshrl.u32 %v1969, 7
    %v1971 = vsub.s32 %v1968, %v1970
    %v1972 = vrot.slane %v1935, %v1971
    %v1974 = vunpack.c.l.s4 842150450
    %v1975 = vunpack.c.0.s8 %v1974
    %v1976 = vlaneseq
    %v1977 = vshrl.u32 %v1976, 7
    %v1978 = vsub.s32 %v1975, %v1977
    %v1979 = vrot.slane %v1935, %v1978
    %v1981 = vunpack.c.l.s4 1414812756
    %v1982 = vunpack.c.0.s8 %v1981
    %v1983 = vlaneseq
    %v1984 = vshrl.u32 %v1983, 7
    %v1985 = vsub.s32 %v1982, %v1984
    %v1986 = vrot.slane %v1935, %v1985
    %v1988 = vunpack.c.l.s4 1987475062
    %v1989 = vunpack.c.0.s8 %v1988
    %v1990 = vlaneseq
    %v1991 = vshrl.u32 %v1990, 7
    %v1992 = vsub.s32 %v1989, %v1991
    %v1993 = vrot.slane %v1935, %v1992
    %v2002 = vsub.f32 %v1876, %v1944
    %v2003 = vsub.f32 %v1877, %v1951
    %v2004 = vsub.f32 %v1878, %v1958
    %v2005 = vsub.f32 %v1879, %v1965
    %v2006 = vsub.f32 %v1880, %v1972
    %v2007 = vsub.f32 %v1881, %v1979
    %v2008 = vsub.f32 %v1882, %v1986
    %v2009 = vsub.f32 %v1883, %v1993
    %v2010 = vmul.f32 %v2002, %v2002
    %v2011 = vmul.f32 %v2003, %v2003
    %v2012 = vmul.f32 %v2004, %v2004
    %v2013 = vmul.f32 %v2005, %v2005
    %v2014 = vmul.f32 %v2006, %v2006
    %v2015 = vmul.f32 %v2007, %v2007
    %v2016 = vmul.f32 %v2008, %v2008
    %v2017 = vmul.f32 %v2009, %v2009
    %v2026 = vcombine.low %v2010, %v2011
    %v2027 = vcombine.low %v2012, %v2013
    %v2029 = vunpack.c.l.s4 1983009808
    %v2030 = vunpack.c.0.s8 %v2029
    %v2031 = vlaneseq
    %v2032 = vshrl.u32 %v2031, 7
    %v2033 = vsub.s32 %v2030, %v2032
    %v2034 = vrot.slane %v2026, %v2033
    %v2036 = vunpack.c.l.s4 1983009808
    %v2037 = vunpack.c.0.s8 %v2036
    %v2038 = vlaneseq
    %v2039 = vshrl.u32 %v2038, 7
    %v2040 = vsub.s32 %v2037, %v2039
    %v2041 = vrot.slane %v2027, %v2040
    %v2042 = vcombine.low %v2034, %v2041
    %v2043 = vcombine.low %v2014, %v2015
    %v2044 = vcombine.low %v2016, %v2017
    %v2046 = vunpack.c.l.s4 1983009808
    %v2047 = vunpack.c.0.s8 %v2046
    %v2048 = vlaneseq
    %v2049 = vshrl.u32 %v2048, 7
    %v2050 = vsub.s32 %v2047, %v2049
    %v2051 = vrot.slane %v2043, %v2050
    %v2053 = vunpack.c.l.s4 1983009808
    %v2054 = vunpack.c.0.s8 %v2053
    %v2055 = vlaneseq
    %v2056 = vshrl.u32 %v2055, 7
    %v2057 = vsub.s32 %v2054, %v2056
    %v2058 = vrot.slane %v2044, %v2057
    %v2059 = vcombine.low %v2051, %v2058
    %v2062 = vsel %vm115, %v2042, 0.0
    %2063 = vadd.xlane.f32.xlu0 %v2062
    %v2064 = vpop.xlane.xlu0 %2063
    %v2065 = vsel %vm115, %v2059, 0.0
    %2066 = vadd.xlane.f32.xlu0 %v2065
    %v2067 = vpop.xlane.xlu0 %2066
    %v2068 = vmul.f32 %v2064, %v1324
    %v2069 = vmul.f32 %v2067, %v1324
    %v2070 = vadd.f32 %v2068, 1e-05
    %v2071 = vadd.f32 %v2069, 1e-05
    %v2072 = vrsqrt.pop %v2070
    %v2073 = vrsqrt.pop %v2071
    %v2077 = vunpack.c.l.s4 269488144
    %v2078 = vunpack.c.0.s8 %v2077
    %v2079 = vlaneseq
    %v2080 = vshrl.u32 %v2079, 7
    %v2081 = vsub.s32 %v2078, %v2080
    %v2082 = vrot.slane %v2072, %v2081
    %v2084 = vunpack.c.l.s4 842150450
    %v2085 = vunpack.c.0.s8 %v2084
    %v2086 = vlaneseq
    %v2087 = vshrl.u32 %v2086, 7
    %v2088 = vsub.s32 %v2085, %v2087
    %v2089 = vrot.slane %v2072, %v2088
    %v2091 = vunpack.c.l.s4 1414812756
    %v2092 = vunpack.c.0.s8 %v2091
    %v2093 = vlaneseq
    %v2094 = vshrl.u32 %v2093, 7
    %v2095 = vsub.s32 %v2092, %v2094
    %v2096 = vrot.slane %v2072, %v2095
    %v2098 = vunpack.c.l.s4 1987475062
    %v2099 = vunpack.c.0.s8 %v2098
    %v2100 = vlaneseq
    %v2101 = vshrl.u32 %v2100, 7
    %v2102 = vsub.s32 %v2099, %v2101
    %v2103 = vrot.slane %v2072, %v2102
    %v2105 = vunpack.c.l.s4 269488144
    %v2106 = vunpack.c.0.s8 %v2105
    %v2107 = vlaneseq
    %v2108 = vshrl.u32 %v2107, 7
    %v2109 = vsub.s32 %v2106, %v2108
    %v2110 = vrot.slane %v2073, %v2109
    %v2112 = vunpack.c.l.s4 842150450
    %v2113 = vunpack.c.0.s8 %v2112
    %v2114 = vlaneseq
    %v2115 = vshrl.u32 %v2114, 7
    %v2116 = vsub.s32 %v2113, %v2115
    %v2117 = vrot.slane %v2073, %v2116
    %v2119 = vunpack.c.l.s4 1414812756
    %v2120 = vunpack.c.0.s8 %v2119
    %v2121 = vlaneseq
    %v2122 = vshrl.u32 %v2121, 7
    %v2123 = vsub.s32 %v2120, %v2122
    %v2124 = vrot.slane %v2073, %v2123
    %v2126 = vunpack.c.l.s4 1987475062
    %v2127 = vunpack.c.0.s8 %v2126
    %v2128 = vlaneseq
    %v2129 = vshrl.u32 %v2128, 7
    %v2130 = vsub.s32 %v2127, %v2129
    %v2131 = vrot.slane %v2073, %v2130
    %v2140 = vmul.f32 %v2002, %v2082
    %v2141 = vmul.f32 %v2003, %v2089
    %v2142 = vmul.f32 %v2004, %v2096
    %v2143 = vmul.f32 %v2005, %v2103
    %v2144 = vmul.f32 %v2006, %v2110
    %v2145 = vmul.f32 %v2007, %v2117
    %v2146 = vmul.f32 %v2008, %v2124
    %v2147 = vmul.f32 %v2009, %v2131
    %v2148 = vlaneseq
    %v2149 = vshrl.u32 %v2148, 7
    %v2150 = vsub.s32 0, %v2149
    %v2151 = vrot.slane %v64, %v2150
    %v2153 = vcombine.high %v2151, %v2151
    %v2155 = vunpack.c.l.s4 1983009808
    %v2156 = vunpack.c.0.s8 %v2155
    %v2157 = vlaneseq
    %v2158 = vshrl.u32 %v2157, 7
    %v2159 = vsub.s32 %v2156, %v2158
    %v2160 = vrot.slane %v2151, %v2159
    %v2162 = vunpack.c.l.s4 1983009808
    %v2163 = vunpack.c.0.s8 %v2162
    %v2164 = vlaneseq
    %v2165 = vshrl.u32 %v2164, 7
    %v2166 = vsub.s32 %v2163, %v2165
    %v2167 = vrot.slane %v2153, %v2166
    %v2168 = vcombine.high %v2160, %v2160
    %v2169 = vcombine.high %v2167, %v2167
    %2170 = vrot.lane.b32.xlu0 %v2160, 96
    %v2171 = vpop.permute.xlu0 %2170
    %2172 = vrot.lane.b32.xlu0 %v2168, 96
    %v2173 = vpop.permute.xlu0 %2172
    %2174 = vrot.lane.b32.xlu0 %v2167, 96
    %v2175 = vpop.permute.xlu0 %2174
    %2176 = vrot.lane.b32.xlu0 %v2169, 96
    %v2177 = vpop.permute.xlu0 %2176
    %v2182 = vmul.f32 %v2140, %v2171
    %v2183 = vmul.f32 %v2141, %v2173
    %v2184 = vmul.f32 %v2142, %v2175
    %v2185 = vmul.f32 %v2143, %v2177
    %v2186 = vmul.f32 %v2144, %v2171
    %v2187 = vmul.f32 %v2145, %v2173
    %v2188 = vmul.f32 %v2146, %v2175
    %v2189 = vmul.f32 %v2147, %v2177
    %2190 = vrot.lane.b32.xlu0 %v2160, 64
    %v2191 = vpop.permute.xlu0 %2190
    %2192 = vrot.lane.b32.xlu0 %v2168, 64
    %v2193 = vpop.permute.xlu0 %2192
    %2194 = vrot.lane.b32.xlu0 %v2167, 64
    %v2195 = vpop.permute.xlu0 %2194
    %2196 = vrot.lane.b32.xlu0 %v2169, 64
    %v2197 = vpop.permute.xlu0 %2196
    %v2202 = vadd.f32 %v2182, %v2191
    %v2203 = vadd.f32 %v2183, %v2193
    %v2204 = vadd.f32 %v2184, %v2195
    %v2205 = vadd.f32 %v2185, %v2197
    %v2206 = vadd.f32 %v2186, %v2191
    %v2207 = vadd.f32 %v2187, %v2193
    %v2208 = vadd.f32 %v2188, %v2195
    %v2209 = vadd.f32 %v2189, %v2197
    %vm2210 = vcmask 254976
    %2211 = vst.msk [vmem:[#allocation7] sm:$0x3] %vm2210, %v2202
    %2212 = vst.msk [vmem:[#allocation7 + $0x2] sm:$0x3] %vm2210, %v2203
    %2213 = vst.msk [vmem:[#allocation7 + $0x4] sm:$0x3] %vm2210, %v2204
    %2214 = vst.msk [vmem:[#allocation7 + $0x6] sm:$0x3] %vm2210, %v2205
    %2215 = vst.msk [vmem:[#allocation7 + $0x8] sm:$0x3] %vm2210, %v2206
    %2216 = vst.msk [vmem:[#allocation7 + $0xa] sm:$0x3] %vm2210, %v2207
    %2217 = vst.msk [vmem:[#allocation7 + $0xc] sm:$0x3] %vm2210, %v2208
    %2218 = vst.msk [vmem:[#allocation7 + $0xe] sm:$0x3] %vm2210, %v2209
    // Predicated region
    $region18: #{tpu_custom_call.1} parent=1 // pred_check
      _
    $region19: #{tpu_custom_call.1} parent=1 // pred_check_branch
      %2220 = sbr.rel (0) target = $region21
    $region20: #{tpu_custom_call.1} parent=1 // pred_region
      %s2222 = ssub.s32 256, 256
      %2223 = vsyncadd [#allocation4], %s2222
      %s2224 = sshll.u32 [#allocation7], 4
      %s2225 = int_to_ptr.vmem [resolvable:$true] %s2224
      %2230 = dma.vmem_to_hbm [thread:$0]  %s2225, 256, %s2, [#allocation4], 32, 32, 2
    $region21: #{tpu_custom_call.1} parent=1 // pred_fallthru
      _
    // Predicated region
    $region22: #{tpu_custom_call.1} parent=1 // pred_check
      _
    $region23: #{tpu_custom_call.1} parent=1 // pred_check_branch
      %2232 = sbr.rel (0) target = $region25
    $region24: #{tpu_custom_call.1} parent=1 // pred_region
      %s2234 = ssub.s32 32, 32
      %2235 = vsyncadd [#allocation9], %s2234
      %s2237 = sshll.u32 [#allocation8], 4
      %s2238 = int_to_ptr.vmem [resolvable:$true] %s2237
      %2240 = dma.vmem_to_hbm [thread:$0]  %s2238, 32, %s3, [#allocation9]
    $region25: #{tpu_custom_call.1} parent=1 // pred_fallthru
      _
    // Predicated region
    $region26: #{tpu_custom_call.1} parent=1 // pred_check
      _
    $region27: #{tpu_custom_call.1} parent=1 // pred_check_branch
      %2242 = sbr.rel (0) target = $region29
    $region28: #{tpu_custom_call.1} parent=1 // pred_region
      %2243 = dma.done [#allocation4], 256
    $region29: #{tpu_custom_call.1} parent=1 // pred_fallthru
      _
    // Predicated region
    $region30: #{tpu_custom_call.1} parent=1 // pred_check
      _
    $region31: #{tpu_custom_call.1} parent=1 // pred_check_branch
      %2245 = sbr.rel (0) target = $region33
    $region32: #{tpu_custom_call.1} parent=1 // pred_region
      %2246 = dma.done [#allocation9], 32
    $region33: #{tpu_custom_call.1} parent=1 // pred_fallthru
      _
    %2247 = vsyncpa [#allocation3], 1
    %2248 = vsyncpa [#allocation6], 1
    %2249 = vsyncpa [#allocation4], 1
    %2250 = vsyncpa [#allocation9], 1

</llo_original>
